<compile_context>
chip_gen: v7x
topology: tpu7x:2x2x1
jax: 0.10.0
libtpu: 0.0.40
codegen_flags: <defaults>
</compile_context>

<pallas_src>
import functools

import jax
import jax.numpy as jnp
from jax.experimental import pallas as pl
from jax.experimental.pallas import tpu as pltpu

F1 = 128      # width of first feature Linear
F2 = 256      # width of second feature Linear == self.feature_size()
LANE = 128    # TPU lane tile
SUB = 8       # TPU f32 sublane tile


def _round_up(x, m):
    return ((x + m - 1) // m) * m


# ----------------------------------------------------------------------------
# Pallas kernel: feature MLP + hoisted GI precompute + unrolled GRU recurrence
# ----------------------------------------------------------------------------
def _rollout_encoder_kernel(state_ref, reward_ref, w1_ref, w2_ref, wih_ref,
                            whh_ref, small_ref, out_ref, *, T, Bp, Hp):
    f32 = jnp.float32
    bf16 = jnp.bfloat16

    # ---- one-time loads of the packed one-row operands ----------------------
    small = small_ref[...]                              # (8, 3*Hp) f32
    b1 = small[0:1, :F1]                                # (1, 128)
    b2 = small[1:2, :F2]                                # (1, 256)
    bih = small[2:3, :]                                 # (1, 3*Hp)  b_i* (+ folded b_hr/b_hz)
    wihr = small[3:4, :]                                # (1, 3*Hp)  reward -> gates
    # n-gate hidden bias: broadcast ONCE before the loop (not per step).
    bhh_n = jnp.broadcast_to(small[4:5, 2 * Hp:3 * Hp], (Bp, Hp))   # (Bp, Hp)

    # ---- feature MLP: Linear(obs,128) -> ReLU -> Linear(128,256) -> ReLU ----
    x = state_ref[...]                                  # (T*Bp, obs) bf16
    h1 = jnp.maximum(
        jnp.dot(x, w1_ref[...], preferred_element_type=f32) + b1, 0.0)
    feat = jnp.maximum(
        jnp.dot(h1.astype(bf16), w2_ref[...], preferred_element_type=f32) + b2, 0.0)

    # ---- hoisted input-side gate projections for ALL timesteps --------------
    # One (T*Bp, 256) x (256, 3*Hp) matmul; reward and input biases folded in,
    # so the recurrence loop never touches them.
    gi_all = (jnp.dot(feat.astype(bf16), wih_ref[...], preferred_element_type=f32)
              + reward_ref[...] * wihr + bih)           # (T*Bp, 3*Hp) f32

    # ---- loop-invariant recurrent weight (bf16, contraction de-padded) ------
    whh = whh_ref[...]                                  # (Hr, 3*Hp) bf16
    Hr = whh.shape[0]

    # ---- GRU over time (PyTorch gate order r, z, n; h0 = 0) -----------------
    h = jnp.zeros((Bp, Hp), f32)
    # T is small & static -> full unroll gives the LLO scheduler cross-step
    # visibility. TODO(synk): for T > ~16 switch to lax.fori_loop(unroll=4..8).
    for t in range(T):
        gi = gi_all[t * Bp:(t + 1) * Bp, :]             # sublane-tile aligned view
        gh = jnp.dot(h[:, :Hr].astype(bf16), whh,
                     preferred_element_type=f32)        # (Bp, 3*Hp)
        # 128-lane-aligned static gate slices (free on TPU layout).
        r = jax.nn.sigmoid(gi[:, 0:Hp] + gh[:, 0:Hp])
        z = jax.nn.sigmoid(gi[:, Hp:2 * Hp] + gh[:, Hp:2 * Hp])
        n = jnp.tanh(gi[:, 2 * Hp:3 * Hp] + r * (gh[:, 2 * Hp:3 * Hp] + bhh_n))
        h = (1.0 - z) * n + z * h

    out_ref[...] = h                                    # lane-dense (Bp, Hp) store


# ----------------------------------------------------------------------------
# Eager one-time weight repack (fused gates, each padded to a 128-lane block)
# ----------------------------------------------------------------------------
def _pack_params(params, hidden_size):
    p = params
    H = hidden_size
    Hp = _round_up(H, LANE)          # per-gate lane-padded width
    Hr = _round_up(H, 16)            # de-padded contraction rows (bf16 sublanes)
    G = 3 * Hp
    f32, bf16 = jnp.float32, jnp.bfloat16

    # PyTorch Linear does y = x @ W^T + b -> pre-transpose for the kernel.
    w1 = p["W1"].T.astype(bf16)                          # (obs, 128)
    w2 = p["W2"].T.astype(bf16)                          # (128, 256)

    # PyTorch GRU weight_ih_l0: (3H, F2+1), rows ordered [r, z, n].
    wih = jnp.zeros((F2, G), f32)                        # feature -> gates
    whh = jnp.zeros((Hr, G), f32)                        # hidden  -> gates (de-padded rows)
    small = jnp.zeros((SUB, G), f32)                     # packed one-row operands
    small = small.at[0, :F1].set(p["b1"])
    small = small.at[1, :F2].set(p["b2"])
    for g in range(3):
        rows = slice(g * H, (g + 1) * H)
        cols = slice(g * Hp, g * Hp + H)
        wih = wih.at[:, cols].set(p["Wih"][rows, :F2].T)
        whh = whh.at[:H, cols].set(p["Whh"][rows, :].T)
        small = small.at[3, cols].set(p["Wih"][rows, F2])          # reward column
        bias = p["bih"][rows]
        if g < 2:                    # fold b_hr / b_hz into b_ir / b_iz (exact)
            bias = bias + p["bhh"][rows]
        small = small.at[2, cols].set(bias)
    # n-gate hidden bias must stay inside r*(...) -> kept separate.
    small = small.at[4, 2 * Hp:2 * Hp + H].set(p["bhh"][2 * H:3 * H])

    return dict(w1=w1, w2=w2, wih=wih.astype(bf16), whh=whh.astype(bf16),
                small=small)


# ----------------------------------------------------------------------------
# Factory: repack once, return a jitted (state, reward) -> (B, H) forward
# ----------------------------------------------------------------------------
def make_old_rollout_encoder(params, hidden_size):
    packed = _pack_params(params, hidden_size)
    H = hidden_size
    Hp = _round_up(H, LANE)

    @jax.jit
    def apply(state, reward):
        T, B, obs_dim = state.shape
        Bp = _round_up(max(B, SUB), SUB)
        # Pad batch to a full sublane tile; padded rows are sliced away below.
        state_p = jnp.pad(state, ((0, 0), (0, Bp - B), (0, 0)))
        reward_p = jnp.pad(reward, ((0, 0), (0, Bp - B), (0, 0)))
        state2d = state_p.reshape(T * Bp, obs_dim).astype(jnp.bfloat16)
        reward2d = reward_p.reshape(T * Bp, 1).astype(jnp.float32)

        kernel = functools.partial(_rollout_encoder_kernel, T=T, Bp=Bp, Hp=Hp)
        # Single un-gridded invocation: everything fits trivially in VMEM at
        # these shapes. For non-toy shapes: add a "parallel" batch-group grid
        # axis (v7x dual-TC) and a T-chunk grid for the MLP/GI phase with an
        # "arbitrary" time axis + explicit vmem_limit_bytes (v7x 64 MiB VMEM).
        out = pl.pallas_call(
            kernel,
            out_shape=jax.ShapeDtypeStruct((Bp, Hp), jnp.float32),
            in_specs=[pl.BlockSpec(memory_space=pltpu.MemorySpace.VMEM)] * 7,
            out_specs=pl.BlockSpec(memory_space=pltpu.MemorySpace.VMEM),
        )(state2d, reward2d, packed["w1"], packed["w2"], packed["wih"],
          packed["whh"], packed["small"])
        return out[:B, :H]

    return apply


# ----------------------------------------------------------------------------
# Deterministic parameter init (PyTorch-style uniform bounds)
# ----------------------------------------------------------------------------
def init_params(key, obs_dim, hidden_size):
    ks = jax.random.split(key, 8)

    def unif(k, shape, fan_in):
        bound = 1.0 / float(fan_in) ** 0.5
        return jax.random.uniform(k, shape, jnp.float32, -bound, bound)

    H = hidden_size
    D = F2 + 1  # GRU input size = feature_size() + 1
    return dict(
        W1=unif(ks[0], (F1, obs_dim), obs_dim),
        b1=unif(ks[1], (F1,), obs_dim),
        W2=unif(ks[2], (F2, F1), F1),
        b2=unif(ks[3], (F2,), F1),
        Wih=unif(ks[4], (3 * H, D), H),
        Whh=unif(ks[5], (3 * H, H), H),
        bih=unif(ks[6], (3 * H,), H),
        bhh=unif(ks[7], (3 * H,), H),
    )


# ----------------------------------------------------------------------------
# Pure-JAX f32 reference (mirrors the PyTorch forward exactly)
# ----------------------------------------------------------------------------
def reference_forward(state, reward, p, H):
    T, B, obs = state.shape
    x = state.reshape(T * B, obs)
    h1 = jax.nn.relu(x @ p["W1"].T + p["b1"])
    feat = jax.nn.relu(h1 @ p["W2"].T + p["b2"]).reshape(T, B, F2)
    rnn_in = jnp.concatenate([feat, reward], axis=2)          # (T, B, 257)
    h = jnp.zeros((B, H), jnp.float32)
    for t in range(T):
        gi = rnn_in[t] @ p["Wih"].T + p["bih"]
        gh = h @ p["Whh"].T + p["bhh"]
        i_r, i_z, i_n = jnp.split(gi, 3, axis=1)
        h_r, h_z, h_n = jnp.split(gh, 3, axis=1)
        r = jax.nn.sigmoid(i_r + h_r)
        z = jax.nn.sigmoid(i_z + h_z)
        n = jnp.tanh(i_n + r * h_n)
        h = (1.0 - z) * n + z * h
    return h


if __name__ == "__main__":
    T, B, OBS_DIM, HIDDEN = 8, 2, 16, 32   # seq=8, batch=2, in_shape=(16,), hidden=32

    key = jax.random.PRNGKey(0)
    kp, ks, kr = jax.random.split(key, 3)
    params = init_params(kp, OBS_DIM, HIDDEN)
    state = jax.random.normal(ks, (T, B, OBS_DIM), jnp.float32)
    reward = jax.random.normal(kr, (T, B, 1), jnp.float32)

    encoder = make_old_rollout_encoder(params, HIDDEN)   # repack once, jitted apply
    out = jax.block_until_ready(encoder(state, reward))

    ref = reference_forward(state, reward, params, HIDDEN)
    assert out.shape == (B, HIDDEN), out.shape
    # Tolerance reflects bf16 MXU operands (per perf review); the f32 reference
    # is the exact PyTorch semantics. Gate math in-kernel stays f32.
    assert jnp.allclose(out, ref, atol=2e-2, rtol=2e-2), \
        float(jnp.max(jnp.abs(out - ref)))
    print("KERNEL_OK")
</pallas_src>

<mosaic_0001>
module attributes {stable_mosaic.version = 11 : i64} {
  func.func @_rollout_encoder_kernel(%arg0: memref<64x16xbf16, #tpu.memory_space<vmem>>, %arg1: memref<64x1xf32, #tpu.memory_space<vmem>>, %arg2: memref<16x128xbf16, #tpu.memory_space<vmem>>, %arg3: memref<128x256xbf16, #tpu.memory_space<vmem>>, %arg4: memref<256x384xbf16, #tpu.memory_space<vmem>>, %arg5: memref<32x384xbf16, #tpu.memory_space<vmem>>, %arg6: memref<8x384xf32, #tpu.memory_space<vmem>>, %arg7: memref<8x128xf32, #tpu.memory_space<vmem>>) attributes {dimension_semantics = [], scalar_prefetch = 0 : i64, scratch_operands = 0 : i64, tpu.core_type = #tpu.core_type<tc>} {
    %c0 = arith.constant 0 : index
    %c0_0 = arith.constant 0 : index
    %0 = vector.load %arg6[%c0, %c0_0] : memref<8x384xf32, #tpu.memory_space<vmem>>, vector<8x384xf32>
    %1 = vector.extract_strided_slice %0 {offsets = [0, 0], sizes = [1, 128], strides = [1, 1]} : vector<8x384xf32> to vector<1x128xf32>
    %2 = vector.extract_strided_slice %0 {offsets = [1, 0], sizes = [1, 256], strides = [1, 1]} : vector<8x384xf32> to vector<1x256xf32>
    %3 = vector.extract_strided_slice %0 {offsets = [2, 0], sizes = [1, 384], strides = [1, 1]} : vector<8x384xf32> to vector<1x384xf32>
    %4 = vector.extract_strided_slice %0 {offsets = [3, 0], sizes = [1, 384], strides = [1, 1]} : vector<8x384xf32> to vector<1x384xf32>
    %5 = vector.extract_strided_slice %0 {offsets = [4, 256], sizes = [1, 128], strides = [1, 1]} : vector<8x384xf32> to vector<1x128xf32>
    %6 = vector.shape_cast %5 : vector<1x128xf32> to vector<1x128xf32>
    %7 = vector.broadcast %6 : vector<1x128xf32> to vector<8x128xf32>
    %c0_1 = arith.constant 0 : index
    %c0_2 = arith.constant 0 : index
    %8 = vector.load %arg0[%c0_1, %c0_2] : memref<64x16xbf16, #tpu.memory_space<vmem>>, vector<64x16xbf16>
    %c0_3 = arith.constant 0 : index
    %c0_4 = arith.constant 0 : index
    %9 = vector.load %arg2[%c0_3, %c0_4] : memref<16x128xbf16, #tpu.memory_space<vmem>>, vector<16x128xbf16>
    %cst = arith.constant dense<0.000000e+00> : vector<64x128xf32>
    %10 = tpu.matmul %8, %9, %cst {dimension_numbers = #tpu.dot_dimension_numbers<[1], [0], [0], [1], [0, 0, 1, 1], [], []>} : vector<64x16xbf16>, vector<16x128xbf16>, vector<64x128xf32> -> vector<64x128xf32>
    %11 = vector.broadcast %1 : vector<1x128xf32> to vector<64x128xf32>
    %12 = arith.addf %10, %11 : vector<64x128xf32>
    %cst_5 = arith.constant 0.000000e+00 : f32
    %13 = vector.broadcast %cst_5 : f32 to vector<64x128xf32>
    %14 = arith.maximumf %12, %13 : vector<64x128xf32>
    %15 = arith.truncf %14 : vector<64x128xf32> to vector<64x128xbf16>
    %c0_6 = arith.constant 0 : index
    %c0_7 = arith.constant 0 : index
    %16 = vector.load %arg3[%c0_6, %c0_7] : memref<128x256xbf16, #tpu.memory_space<vmem>>, vector<128x256xbf16>
    %cst_8 = arith.constant dense<0.000000e+00> : vector<64x256xf32>
    %17 = tpu.matmul %15, %16, %cst_8 {dimension_numbers = #tpu.dot_dimension_numbers<[1], [0], [0], [1], [0, 0, 1, 1], [], []>} : vector<64x128xbf16>, vector<128x256xbf16>, vector<64x256xf32> -> vector<64x256xf32>
    %18 = vector.broadcast %2 : vector<1x256xf32> to vector<64x256xf32>
    %19 = arith.addf %17, %18 : vector<64x256xf32>
    %cst_9 = arith.constant 0.000000e+00 : f32
    %20 = vector.broadcast %cst_9 : f32 to vector<64x256xf32>
    %21 = arith.maximumf %19, %20 : vector<64x256xf32>
    %22 = arith.truncf %21 : vector<64x256xf32> to vector<64x256xbf16>
    %c0_10 = arith.constant 0 : index
    %c0_11 = arith.constant 0 : index
    %23 = vector.load %arg4[%c0_10, %c0_11] : memref<256x384xbf16, #tpu.memory_space<vmem>>, vector<256x384xbf16>
    %cst_12 = arith.constant dense<0.000000e+00> : vector<64x384xf32>
    %24 = tpu.matmul %22, %23, %cst_12 {dimension_numbers = #tpu.dot_dimension_numbers<[1], [0], [0], [1], [0, 0, 1, 1], [], []>} : vector<64x256xbf16>, vector<256x384xbf16>, vector<64x384xf32> -> vector<64x384xf32>
    %c0_13 = arith.constant 0 : index
    %c0_14 = arith.constant 0 : index
    %25 = vector.load %arg1[%c0_13, %c0_14] : memref<64x1xf32, #tpu.memory_space<vmem>>, vector<64x1xf32>
    %26 = vector.broadcast %25 : vector<64x1xf32> to vector<64x384xf32>
    %27 = vector.broadcast %4 : vector<1x384xf32> to vector<64x384xf32>
    %28 = arith.mulf %26, %27 : vector<64x384xf32>
    %29 = arith.addf %24, %28 : vector<64x384xf32>
    %30 = vector.broadcast %3 : vector<1x384xf32> to vector<64x384xf32>
    %31 = arith.addf %29, %30 : vector<64x384xf32>
    %c0_15 = arith.constant 0 : index
    %c0_16 = arith.constant 0 : index
    %32 = vector.load %arg5[%c0_15, %c0_16] : memref<32x384xbf16, #tpu.memory_space<vmem>>, vector<32x384xbf16>
    %cst_17 = arith.constant 0.000000e+00 : f32
    %33 = vector.broadcast %cst_17 : f32 to vector<8x128xf32>
    %34 = vector.extract_strided_slice %31 {offsets = [0, 0], sizes = [8, 384], strides = [1, 1]} : vector<64x384xf32> to vector<8x384xf32>
    %35 = vector.extract_strided_slice %33 {offsets = [0, 0], sizes = [8, 32], strides = [1, 1]} : vector<8x128xf32> to vector<8x32xf32>
    %36 = arith.truncf %35 : vector<8x32xf32> to vector<8x32xbf16>
    %cst_18 = arith.constant dense<0.000000e+00> : vector<8x384xf32>
    %37 = tpu.matmul %36, %32, %cst_18 {dimension_numbers = #tpu.dot_dimension_numbers<[1], [0], [0], [1], [0, 0, 1, 1], [], []>} : vector<8x32xbf16>, vector<32x384xbf16>, vector<8x384xf32> -> vector<8x384xf32>
    %38 = vector.extract_strided_slice %34 {offsets = [0, 0], sizes = [8, 128], strides = [1, 1]} : vector<8x384xf32> to vector<8x128xf32>
    %39 = vector.extract_strided_slice %37 {offsets = [0, 0], sizes = [8, 128], strides = [1, 1]} : vector<8x384xf32> to vector<8x128xf32>
    %40 = arith.addf %38, %39 : vector<8x128xf32>
    %41 = arith.negf %40 : vector<8x128xf32>
    %42 = math.exp %41 : vector<8x128xf32>
    %cst_19 = arith.constant 1.000000e+00 : f32
    %43 = vector.broadcast %cst_19 : f32 to vector<8x128xf32>
    %44 = arith.addf %43, %42 : vector<8x128xf32>
    %45 = arith.divf %43, %44 : vector<8x128xf32>
    %46 = vector.extract_strided_slice %34 {offsets = [0, 128], sizes = [8, 128], strides = [1, 1]} : vector<8x384xf32> to vector<8x128xf32>
    %47 = vector.extract_strided_slice %37 {offsets = [0, 128], sizes = [8, 128], strides = [1, 1]} : vector<8x384xf32> to vector<8x128xf32>
    %48 = arith.addf %46, %47 : vector<8x128xf32>
    %49 = arith.negf %48 : vector<8x128xf32>
    %50 = math.exp %49 : vector<8x128xf32>
    %cst_20 = arith.constant 1.000000e+00 : f32
    %51 = vector.broadcast %cst_20 : f32 to vector<8x128xf32>
    %52 = arith.addf %51, %50 : vector<8x128xf32>
    %53 = arith.divf %51, %52 : vector<8x128xf32>
    %54 = vector.extract_strided_slice %34 {offsets = [0, 256], sizes = [8, 128], strides = [1, 1]} : vector<8x384xf32> to vector<8x128xf32>
    %55 = vector.extract_strided_slice %37 {offsets = [0, 256], sizes = [8, 128], strides = [1, 1]} : vector<8x384xf32> to vector<8x128xf32>
    %56 = arith.addf %55, %7 : vector<8x128xf32>
    %57 = arith.mulf %45, %56 : vector<8x128xf32>
    %58 = arith.addf %54, %57 : vector<8x128xf32>
    %59 = math.tanh %58 : vector<8x128xf32>
    %cst_21 = arith.constant 1.000000e+00 : f32
    %60 = vector.broadcast %cst_21 : f32 to vector<8x128xf32>
    %61 = arith.subf %60, %53 : vector<8x128xf32>
    %62 = arith.mulf %61, %59 : vector<8x128xf32>
    %63 = arith.mulf %53, %33 : vector<8x128xf32>
    %64 = arith.addf %62, %63 : vector<8x128xf32>
    %65 = vector.extract_strided_slice %31 {offsets = [8, 0], sizes = [8, 384], strides = [1, 1]} : vector<64x384xf32> to vector<8x384xf32>
    %66 = vector.extract_strided_slice %64 {offsets = [0, 0], sizes = [8, 32], strides = [1, 1]} : vector<8x128xf32> to vector<8x32xf32>
    %67 = arith.truncf %66 : vector<8x32xf32> to vector<8x32xbf16>
    %cst_22 = arith.constant dense<0.000000e+00> : vector<8x384xf32>
    %68 = tpu.matmul %67, %32, %cst_22 {dimension_numbers = #tpu.dot_dimension_numbers<[1], [0], [0], [1], [0, 0, 1, 1], [], []>} : vector<8x32xbf16>, vector<32x384xbf16>, vector<8x384xf32> -> vector<8x384xf32>
    %69 = vector.extract_strided_slice %65 {offsets = [0, 0], sizes = [8, 128], strides = [1, 1]} : vector<8x384xf32> to vector<8x128xf32>
    %70 = vector.extract_strided_slice %68 {offsets = [0, 0], sizes = [8, 128], strides = [1, 1]} : vector<8x384xf32> to vector<8x128xf32>
    %71 = arith.addf %69, %70 : vector<8x128xf32>
    %72 = arith.negf %71 : vector<8x128xf32>
    %73 = math.exp %72 : vector<8x128xf32>
    %cst_23 = arith.constant 1.000000e+00 : f32
    %74 = vector.broadcast %cst_23 : f32 to vector<8x128xf32>
    %75 = arith.addf %74, %73 : vector<8x128xf32>
    %76 = arith.divf %74, %75 : vector<8x128xf32>
    %77 = vector.extract_strided_slice %65 {offsets = [0, 128], sizes = [8, 128], strides = [1, 1]} : vector<8x384xf32> to vector<8x128xf32>
    %78 = vector.extract_strided_slice %68 {offsets = [0, 128], sizes = [8, 128], strides = [1, 1]} : vector<8x384xf32> to vector<8x128xf32>
    %79 = arith.addf %77, %78 : vector<8x128xf32>
    %80 = arith.negf %79 : vector<8x128xf32>
    %81 = math.exp %80 : vector<8x128xf32>
    %cst_24 = arith.constant 1.000000e+00 : f32
    %82 = vector.broadcast %cst_24 : f32 to vector<8x128xf32>
    %83 = arith.addf %82, %81 : vector<8x128xf32>
    %84 = arith.divf %82, %83 : vector<8x128xf32>
    %85 = vector.extract_strided_slice %65 {offsets = [0, 256], sizes = [8, 128], strides = [1, 1]} : vector<8x384xf32> to vector<8x128xf32>
    %86 = vector.extract_strided_slice %68 {offsets = [0, 256], sizes = [8, 128], strides = [1, 1]} : vector<8x384xf32> to vector<8x128xf32>
    %87 = arith.addf %86, %7 : vector<8x128xf32>
    %88 = arith.mulf %76, %87 : vector<8x128xf32>
    %89 = arith.addf %85, %88 : vector<8x128xf32>
    %90 = math.tanh %89 : vector<8x128xf32>
    %cst_25 = arith.constant 1.000000e+00 : f32
    %91 = vector.broadcast %cst_25 : f32 to vector<8x128xf32>
    %92 = arith.subf %91, %84 : vector<8x128xf32>
    %93 = arith.mulf %92, %90 : vector<8x128xf32>
    %94 = arith.mulf %84, %64 : vector<8x128xf32>
    %95 = arith.addf %93, %94 : vector<8x128xf32>
    %96 = vector.extract_strided_slice %31 {offsets = [16, 0], sizes = [8, 384], strides = [1, 1]} : vector<64x384xf32> to vector<8x384xf32>
    %97 = vector.extract_strided_slice %95 {offsets = [0, 0], sizes = [8, 32], strides = [1, 1]} : vector<8x128xf32> to vector<8x32xf32>
    %98 = arith.truncf %97 : vector<8x32xf32> to vector<8x32xbf16>
    %cst_26 = arith.constant dense<0.000000e+00> : vector<8x384xf32>
    %99 = tpu.matmul %98, %32, %cst_26 {dimension_numbers = #tpu.dot_dimension_numbers<[1], [0], [0], [1], [0, 0, 1, 1], [], []>} : vector<8x32xbf16>, vector<32x384xbf16>, vector<8x384xf32> -> vector<8x384xf32>
    %100 = vector.extract_strided_slice %96 {offsets = [0, 0], sizes = [8, 128], strides = [1, 1]} : vector<8x384xf32> to vector<8x128xf32>
    %101 = vector.extract_strided_slice %99 {offsets = [0, 0], sizes = [8, 128], strides = [1, 1]} : vector<8x384xf32> to vector<8x128xf32>
    %102 = arith.addf %100, %101 : vector<8x128xf32>
    %103 = arith.negf %102 : vector<8x128xf32>
    %104 = math.exp %103 : vector<8x128xf32>
    %cst_27 = arith.constant 1.000000e+00 : f32
    %105 = vector.broadcast %cst_27 : f32 to vector<8x128xf32>
    %106 = arith.addf %105, %104 : vector<8x128xf32>
    %107 = arith.divf %105, %106 : vector<8x128xf32>
    %108 = vector.extract_strided_slice %96 {offsets = [0, 128], sizes = [8, 128], strides = [1, 1]} : vector<8x384xf32> to vector<8x128xf32>
    %109 = vector.extract_strided_slice %99 {offsets = [0, 128], sizes = [8, 128], strides = [1, 1]} : vector<8x384xf32> to vector<8x128xf32>
    %110 = arith.addf %108, %109 : vector<8x128xf32>
    %111 = arith.negf %110 : vector<8x128xf32>
    %112 = math.exp %111 : vector<8x128xf32>
    %cst_28 = arith.constant 1.000000e+00 : f32
    %113 = vector.broadcast %cst_28 : f32 to vector<8x128xf32>
    %114 = arith.addf %113, %112 : vector<8x128xf32>
    %115 = arith.divf %113, %114 : vector<8x128xf32>
    %116 = vector.extract_strided_slice %96 {offsets = [0, 256], sizes = [8, 128], strides = [1, 1]} : vector<8x384xf32> to vector<8x128xf32>
    %117 = vector.extract_strided_slice %99 {offsets = [0, 256], sizes = [8, 128], strides = [1, 1]} : vector<8x384xf32> to vector<8x128xf32>
    %118 = arith.addf %117, %7 : vector<8x128xf32>
    %119 = arith.mulf %107, %118 : vector<8x128xf32>
    %120 = arith.addf %116, %119 : vector<8x128xf32>
    %121 = math.tanh %120 : vector<8x128xf32>
    %cst_29 = arith.constant 1.000000e+00 : f32
    %122 = vector.broadcast %cst_29 : f32 to vector<8x128xf32>
    %123 = arith.subf %122, %115 : vector<8x128xf32>
    %124 = arith.mulf %123, %121 : vector<8x128xf32>
    %125 = arith.mulf %115, %95 : vector<8x128xf32>
    %126 = arith.addf %124, %125 : vector<8x128xf32>
    %127 = vector.extract_strided_slice %31 {offsets = [24, 0], sizes = [8, 384], strides = [1, 1]} : vector<64x384xf32> to vector<8x384xf32>
    %128 = vector.extract_strided_slice %126 {offsets = [0, 0], sizes = [8, 32], strides = [1, 1]} : vector<8x128xf32> to vector<8x32xf32>
    %129 = arith.truncf %128 : vector<8x32xf32> to vector<8x32xbf16>
    %cst_30 = arith.constant dense<0.000000e+00> : vector<8x384xf32>
    %130 = tpu.matmul %129, %32, %cst_30 {dimension_numbers = #tpu.dot_dimension_numbers<[1], [0], [0], [1], [0, 0, 1, 1], [], []>} : vector<8x32xbf16>, vector<32x384xbf16>, vector<8x384xf32> -> vector<8x384xf32>
    %131 = vector.extract_strided_slice %127 {offsets = [0, 0], sizes = [8, 128], strides = [1, 1]} : vector<8x384xf32> to vector<8x128xf32>
    %132 = vector.extract_strided_slice %130 {offsets = [0, 0], sizes = [8, 128], strides = [1, 1]} : vector<8x384xf32> to vector<8x128xf32>
    %133 = arith.addf %131, %132 : vector<8x128xf32>
    %134 = arith.negf %133 : vector<8x128xf32>
    %135 = math.exp %134 : vector<8x128xf32>
    %cst_31 = arith.constant 1.000000e+00 : f32
    %136 = vector.broadcast %cst_31 : f32 to vector<8x128xf32>
    %137 = arith.addf %136, %135 : vector<8x128xf32>
    %138 = arith.divf %136, %137 : vector<8x128xf32>
    %139 = vector.extract_strided_slice %127 {offsets = [0, 128], sizes = [8, 128], strides = [1, 1]} : vector<8x384xf32> to vector<8x128xf32>
    %140 = vector.extract_strided_slice %130 {offsets = [0, 128], sizes = [8, 128], strides = [1, 1]} : vector<8x384xf32> to vector<8x128xf32>
    %141 = arith.addf %139, %140 : vector<8x128xf32>
    %142 = arith.negf %141 : vector<8x128xf32>
    %143 = math.exp %142 : vector<8x128xf32>
    %cst_32 = arith.constant 1.000000e+00 : f32
    %144 = vector.broadcast %cst_32 : f32 to vector<8x128xf32>
    %145 = arith.addf %144, %143 : vector<8x128xf32>
    %146 = arith.divf %144, %145 : vector<8x128xf32>
    %147 = vector.extract_strided_slice %127 {offsets = [0, 256], sizes = [8, 128], strides = [1, 1]} : vector<8x384xf32> to vector<8x128xf32>
    %148 = vector.extract_strided_slice %130 {offsets = [0, 256], sizes = [8, 128], strides = [1, 1]} : vector<8x384xf32> to vector<8x128xf32>
    %149 = arith.addf %148, %7 : vector<8x128xf32>
    %150 = arith.mulf %138, %149 : vector<8x128xf32>
    %151 = arith.addf %147, %150 : vector<8x128xf32>
    %152 = math.tanh %151 : vector<8x128xf32>
    %cst_33 = arith.constant 1.000000e+00 : f32
    %153 = vector.broadcast %cst_33 : f32 to vector<8x128xf32>
    %154 = arith.subf %153, %146 : vector<8x128xf32>
    %155 = arith.mulf %154, %152 : vector<8x128xf32>
    %156 = arith.mulf %146, %126 : vector<8x128xf32>
    %157 = arith.addf %155, %156 : vector<8x128xf32>
    %158 = vector.extract_strided_slice %31 {offsets = [32, 0], sizes = [8, 384], strides = [1, 1]} : vector<64x384xf32> to vector<8x384xf32>
    %159 = vector.extract_strided_slice %157 {offsets = [0, 0], sizes = [8, 32], strides = [1, 1]} : vector<8x128xf32> to vector<8x32xf32>
    %160 = arith.truncf %159 : vector<8x32xf32> to vector<8x32xbf16>
    %cst_34 = arith.constant dense<0.000000e+00> : vector<8x384xf32>
    %161 = tpu.matmul %160, %32, %cst_34 {dimension_numbers = #tpu.dot_dimension_numbers<[1], [0], [0], [1], [0, 0, 1, 1], [], []>} : vector<8x32xbf16>, vector<32x384xbf16>, vector<8x384xf32> -> vector<8x384xf32>
    %162 = vector.extract_strided_slice %158 {offsets = [0, 0], sizes = [8, 128], strides = [1, 1]} : vector<8x384xf32> to vector<8x128xf32>
    %163 = vector.extract_strided_slice %161 {offsets = [0, 0], sizes = [8, 128], strides = [1, 1]} : vector<8x384xf32> to vector<8x128xf32>
    %164 = arith.addf %162, %163 : vector<8x128xf32>
    %165 = arith.negf %164 : vector<8x128xf32>
    %166 = math.exp %165 : vector<8x128xf32>
    %cst_35 = arith.constant 1.000000e+00 : f32
    %167 = vector.broadcast %cst_35 : f32 to vector<8x128xf32>
    %168 = arith.addf %167, %166 : vector<8x128xf32>
    %169 = arith.divf %167, %168 : vector<8x128xf32>
    %170 = vector.extract_strided_slice %158 {offsets = [0, 128], sizes = [8, 128], strides = [1, 1]} : vector<8x384xf32> to vector<8x128xf32>
    %171 = vector.extract_strided_slice %161 {offsets = [0, 128], sizes = [8, 128], strides = [1, 1]} : vector<8x384xf32> to vector<8x128xf32>
    %172 = arith.addf %170, %171 : vector<8x128xf32>
    %173 = arith.negf %172 : vector<8x128xf32>
    %174 = math.exp %173 : vector<8x128xf32>
    %cst_36 = arith.constant 1.000000e+00 : f32
    %175 = vector.broadcast %cst_36 : f32 to vector<8x128xf32>
    %176 = arith.addf %175, %174 : vector<8x128xf32>
    %177 = arith.divf %175, %176 : vector<8x128xf32>
    %178 = vector.extract_strided_slice %158 {offsets = [0, 256], sizes = [8, 128], strides = [1, 1]} : vector<8x384xf32> to vector<8x128xf32>
    %179 = vector.extract_strided_slice %161 {offsets = [0, 256], sizes = [8, 128], strides = [1, 1]} : vector<8x384xf32> to vector<8x128xf32>
    %180 = arith.addf %179, %7 : vector<8x128xf32>
    %181 = arith.mulf %169, %180 : vector<8x128xf32>
    %182 = arith.addf %178, %181 : vector<8x128xf32>
    %183 = math.tanh %182 : vector<8x128xf32>
    %cst_37 = arith.constant 1.000000e+00 : f32
    %184 = vector.broadcast %cst_37 : f32 to vector<8x128xf32>
    %185 = arith.subf %184, %177 : vector<8x128xf32>
    %186 = arith.mulf %185, %183 : vector<8x128xf32>
    %187 = arith.mulf %177, %157 : vector<8x128xf32>
    %188 = arith.addf %186, %187 : vector<8x128xf32>
    %189 = vector.extract_strided_slice %31 {offsets = [40, 0], sizes = [8, 384], strides = [1, 1]} : vector<64x384xf32> to vector<8x384xf32>
    %190 = vector.extract_strided_slice %188 {offsets = [0, 0], sizes = [8, 32], strides = [1, 1]} : vector<8x128xf32> to vector<8x32xf32>
    %191 = arith.truncf %190 : vector<8x32xf32> to vector<8x32xbf16>
    %cst_38 = arith.constant dense<0.000000e+00> : vector<8x384xf32>
    %192 = tpu.matmul %191, %32, %cst_38 {dimension_numbers = #tpu.dot_dimension_numbers<[1], [0], [0], [1], [0, 0, 1, 1], [], []>} : vector<8x32xbf16>, vector<32x384xbf16>, vector<8x384xf32> -> vector<8x384xf32>
    %193 = vector.extract_strided_slice %189 {offsets = [0, 0], sizes = [8, 128], strides = [1, 1]} : vector<8x384xf32> to vector<8x128xf32>
    %194 = vector.extract_strided_slice %192 {offsets = [0, 0], sizes = [8, 128], strides = [1, 1]} : vector<8x384xf32> to vector<8x128xf32>
    %195 = arith.addf %193, %194 : vector<8x128xf32>
    %196 = arith.negf %195 : vector<8x128xf32>
    %197 = math.exp %196 : vector<8x128xf32>
    %cst_39 = arith.constant 1.000000e+00 : f32
    %198 = vector.broadcast %cst_39 : f32 to vector<8x128xf32>
    %199 = arith.addf %198, %197 : vector<8x128xf32>
    %200 = arith.divf %198, %199 : vector<8x128xf32>
    %201 = vector.extract_strided_slice %189 {offsets = [0, 128], sizes = [8, 128], strides = [1, 1]} : vector<8x384xf32> to vector<8x128xf32>
    %202 = vector.extract_strided_slice %192 {offsets = [0, 128], sizes = [8, 128], strides = [1, 1]} : vector<8x384xf32> to vector<8x128xf32>
    %203 = arith.addf %201, %202 : vector<8x128xf32>
    %204 = arith.negf %203 : vector<8x128xf32>
    %205 = math.exp %204 : vector<8x128xf32>
    %cst_40 = arith.constant 1.000000e+00 : f32
    %206 = vector.broadcast %cst_40 : f32 to vector<8x128xf32>
    %207 = arith.addf %206, %205 : vector<8x128xf32>
    %208 = arith.divf %206, %207 : vector<8x128xf32>
    %209 = vector.extract_strided_slice %189 {offsets = [0, 256], sizes = [8, 128], strides = [1, 1]} : vector<8x384xf32> to vector<8x128xf32>
    %210 = vector.extract_strided_slice %192 {offsets = [0, 256], sizes = [8, 128], strides = [1, 1]} : vector<8x384xf32> to vector<8x128xf32>
    %211 = arith.addf %210, %7 : vector<8x128xf32>
    %212 = arith.mulf %200, %211 : vector<8x128xf32>
    %213 = arith.addf %209, %212 : vector<8x128xf32>
    %214 = math.tanh %213 : vector<8x128xf32>
    %cst_41 = arith.constant 1.000000e+00 : f32
    %215 = vector.broadcast %cst_41 : f32 to vector<8x128xf32>
    %216 = arith.subf %215, %208 : vector<8x128xf32>
    %217 = arith.mulf %216, %214 : vector<8x128xf32>
    %218 = arith.mulf %208, %188 : vector<8x128xf32>
    %219 = arith.addf %217, %218 : vector<8x128xf32>
    %220 = vector.extract_strided_slice %31 {offsets = [48, 0], sizes = [8, 384], strides = [1, 1]} : vector<64x384xf32> to vector<8x384xf32>
    %221 = vector.extract_strided_slice %219 {offsets = [0, 0], sizes = [8, 32], strides = [1, 1]} : vector<8x128xf32> to vector<8x32xf32>
    %222 = arith.truncf %221 : vector<8x32xf32> to vector<8x32xbf16>
    %cst_42 = arith.constant dense<0.000000e+00> : vector<8x384xf32>
    %223 = tpu.matmul %222, %32, %cst_42 {dimension_numbers = #tpu.dot_dimension_numbers<[1], [0], [0], [1], [0, 0, 1, 1], [], []>} : vector<8x32xbf16>, vector<32x384xbf16>, vector<8x384xf32> -> vector<8x384xf32>
    %224 = vector.extract_strided_slice %220 {offsets = [0, 0], sizes = [8, 128], strides = [1, 1]} : vector<8x384xf32> to vector<8x128xf32>
    %225 = vector.extract_strided_slice %223 {offsets = [0, 0], sizes = [8, 128], strides = [1, 1]} : vector<8x384xf32> to vector<8x128xf32>
    %226 = arith.addf %224, %225 : vector<8x128xf32>
    %227 = arith.negf %226 : vector<8x128xf32>
    %228 = math.exp %227 : vector<8x128xf32>
    %cst_43 = arith.constant 1.000000e+00 : f32
    %229 = vector.broadcast %cst_43 : f32 to vector<8x128xf32>
    %230 = arith.addf %229, %228 : vector<8x128xf32>
    %231 = arith.divf %229, %230 : vector<8x128xf32>
    %232 = vector.extract_strided_slice %220 {offsets = [0, 128], sizes = [8, 128], strides = [1, 1]} : vector<8x384xf32> to vector<8x128xf32>
    %233 = vector.extract_strided_slice %223 {offsets = [0, 128], sizes = [8, 128], strides = [1, 1]} : vector<8x384xf32> to vector<8x128xf32>
    %234 = arith.addf %232, %233 : vector<8x128xf32>
    %235 = arith.negf %234 : vector<8x128xf32>
    %236 = math.exp %235 : vector<8x128xf32>
    %cst_44 = arith.constant 1.000000e+00 : f32
    %237 = vector.broadcast %cst_44 : f32 to vector<8x128xf32>
    %238 = arith.addf %237, %236 : vector<8x128xf32>
    %239 = arith.divf %237, %238 : vector<8x128xf32>
    %240 = vector.extract_strided_slice %220 {offsets = [0, 256], sizes = [8, 128], strides = [1, 1]} : vector<8x384xf32> to vector<8x128xf32>
    %241 = vector.extract_strided_slice %223 {offsets = [0, 256], sizes = [8, 128], strides = [1, 1]} : vector<8x384xf32> to vector<8x128xf32>
    %242 = arith.addf %241, %7 : vector<8x128xf32>
    %243 = arith.mulf %231, %242 : vector<8x128xf32>
    %244 = arith.addf %240, %243 : vector<8x128xf32>
    %245 = math.tanh %244 : vector<8x128xf32>
    %cst_45 = arith.constant 1.000000e+00 : f32
    %246 = vector.broadcast %cst_45 : f32 to vector<8x128xf32>
    %247 = arith.subf %246, %239 : vector<8x128xf32>
    %248 = arith.mulf %247, %245 : vector<8x128xf32>
    %249 = arith.mulf %239, %219 : vector<8x128xf32>
    %250 = arith.addf %248, %249 : vector<8x128xf32>
    %251 = vector.extract_strided_slice %31 {offsets = [56, 0], sizes = [8, 384], strides = [1, 1]} : vector<64x384xf32> to vector<8x384xf32>
    %252 = vector.extract_strided_slice %250 {offsets = [0, 0], sizes = [8, 32], strides = [1, 1]} : vector<8x128xf32> to vector<8x32xf32>
    %253 = arith.truncf %252 : vector<8x32xf32> to vector<8x32xbf16>
    %cst_46 = arith.constant dense<0.000000e+00> : vector<8x384xf32>
    %254 = tpu.matmul %253, %32, %cst_46 {dimension_numbers = #tpu.dot_dimension_numbers<[1], [0], [0], [1], [0, 0, 1, 1], [], []>} : vector<8x32xbf16>, vector<32x384xbf16>, vector<8x384xf32> -> vector<8x384xf32>
    %255 = vector.extract_strided_slice %251 {offsets = [0, 0], sizes = [8, 128], strides = [1, 1]} : vector<8x384xf32> to vector<8x128xf32>
    %256 = vector.extract_strided_slice %254 {offsets = [0, 0], sizes = [8, 128], strides = [1, 1]} : vector<8x384xf32> to vector<8x128xf32>
    %257 = arith.addf %255, %256 : vector<8x128xf32>
    %258 = arith.negf %257 : vector<8x128xf32>
    %259 = math.exp %258 : vector<8x128xf32>
    %cst_47 = arith.constant 1.000000e+00 : f32
    %260 = vector.broadcast %cst_47 : f32 to vector<8x128xf32>
    %261 = arith.addf %260, %259 : vector<8x128xf32>
    %262 = arith.divf %260, %261 : vector<8x128xf32>
    %263 = vector.extract_strided_slice %251 {offsets = [0, 128], sizes = [8, 128], strides = [1, 1]} : vector<8x384xf32> to vector<8x128xf32>
    %264 = vector.extract_strided_slice %254 {offsets = [0, 128], sizes = [8, 128], strides = [1, 1]} : vector<8x384xf32> to vector<8x128xf32>
    %265 = arith.addf %263, %264 : vector<8x128xf32>
    %266 = arith.negf %265 : vector<8x128xf32>
    %267 = math.exp %266 : vector<8x128xf32>
    %cst_48 = arith.constant 1.000000e+00 : f32
    %268 = vector.broadcast %cst_48 : f32 to vector<8x128xf32>
    %269 = arith.addf %268, %267 : vector<8x128xf32>
    %270 = arith.divf %268, %269 : vector<8x128xf32>
    %271 = vector.extract_strided_slice %251 {offsets = [0, 256], sizes = [8, 128], strides = [1, 1]} : vector<8x384xf32> to vector<8x128xf32>
    %272 = vector.extract_strided_slice %254 {offsets = [0, 256], sizes = [8, 128], strides = [1, 1]} : vector<8x384xf32> to vector<8x128xf32>
    %273 = arith.addf %272, %7 : vector<8x128xf32>
    %274 = arith.mulf %262, %273 : vector<8x128xf32>
    %275 = arith.addf %271, %274 : vector<8x128xf32>
    %276 = math.tanh %275 : vector<8x128xf32>
    %cst_49 = arith.constant 1.000000e+00 : f32
    %277 = vector.broadcast %cst_49 : f32 to vector<8x128xf32>
    %278 = arith.subf %277, %270 : vector<8x128xf32>
    %279 = arith.mulf %278, %276 : vector<8x128xf32>
    %280 = arith.mulf %270, %250 : vector<8x128xf32>
    %281 = arith.addf %279, %280 : vector<8x128xf32>
    %c0_50 = arith.constant 0 : index
    %c0_51 = arith.constant 0 : index
    %282 = vector.load %arg7[%c0_50, %c0_51] : memref<8x128xf32, #tpu.memory_space<vmem>>, vector<8x128xf32>
    tpu.vector_store %arg7[%c0_50, %c0_51], %281 {strides = array<i32>} : memref<8x128xf32, #tpu.memory_space<vmem>>, vector<8x128xf32>,
    return
  }
}

</mosaic_0001>

<llo_original>
// kernel: apply.1
$region0: #{apply.1}
  #allocation0 [shape = 'u32[]', space=smem, size = 0x4, offset = 0x4, fixed_abs, tag = 'smem constant byte address 0x4 - core index']
  #allocation1 [shape = 'u32[144,128]{1,0:T(1,128)}', space=vmem, size = 0x12000, scoped, tag = 'internal scratch']
  %s0 = inlined_call_operand.vmem [shape: bf16[64,16], index: 0, kind: input, shape index: {}]
  %s1 = inlined_call_operand.vmem [shape: f32[64,1], index: 1, kind: input, shape index: {}]
  %s2 = inlined_call_operand.vmem [shape: bf16[16,128], index: 2, kind: input, shape index: {}]
  %s3 = inlined_call_operand.vmem [shape: bf16[128,256], index: 3, kind: input, shape index: {}]
  %s4 = inlined_call_operand.vmem [shape: bf16[256,384], index: 4, kind: input, shape index: {}]
  %s5 = inlined_call_operand.vmem [shape: bf16[32,384], index: 5, kind: input, shape index: {}]
  %s6 = inlined_call_operand.vmem [shape: f32[8,384], index: 6, kind: input, shape index: {}]
  %s7 = inlined_call_operand.vmem [shape: f32[8,128], index: 7, kind: output, shape index: {}]
  %s8 = sld [smem:[#allocation0]]
  $region38: #{apply.1} parent=0
    _
  %s10 = ssub.s32 1, %s8
  %s11 = scalar_select 0, %s10, %s8
  // Predicated region
  $region2: #{apply.1} parent=0 // pred_check
    _
  $region3: #{apply.1} parent=0 // pred_check_branch
    %13 = sbr.rel (0) target = $region5
  $region4: #{apply.1} parent=0 // pred_region
    _
  $region5: #{apply.1} parent=0 // pred_fallthru
    _
  // Predicated region
  $region6: #{apply.1} parent=0 // pred_check
    _
  $region7: #{apply.1} parent=0 // pred_check_branch
    %15 = sbr.rel (0) target = $region9
  $region8: #{apply.1} parent=0 // pred_region
    _
  $region9: #{apply.1} parent=0 // pred_fallthru
    _
  // Predicated region
  $region10: #{apply.1} parent=0 // pred_check
    _
  $region11: #{apply.1} parent=0 // pred_check_branch
    %17 = sbr.rel (0) target = $region13
  $region12: #{apply.1} parent=0 // pred_region
    _
  $region13: #{apply.1} parent=0 // pred_fallthru
    _
  // Predicated region
  $region14: #{apply.1} parent=0 // pred_check
    _
  $region15: #{apply.1} parent=0 // pred_check_branch
    %19 = sbr.rel (0) target = $region17
  $region16: #{apply.1} parent=0 // pred_region
    _
  $region17: #{apply.1} parent=0 // pred_fallthru
    _
  // Predicated region
  $region18: #{apply.1} parent=0 // pred_check
    _
  $region19: #{apply.1} parent=0 // pred_check_branch
    %21 = sbr.rel (0) target = $region21
  $region20: #{apply.1} parent=0 // pred_region
    _
  $region21: #{apply.1} parent=0 // pred_fallthru
    _
  // Predicated region
  $region22: #{apply.1} parent=0 // pred_check
    _
  $region23: #{apply.1} parent=0 // pred_check_branch
    %23 = sbr.rel (0) target = $region25
  $region24: #{apply.1} parent=0 // pred_region
    _
  $region25: #{apply.1} parent=0 // pred_fallthru
    _
  // Predicated region
  $region26: #{apply.1} parent=0 // pred_check
    _
  $region27: #{apply.1} parent=0 // pred_check_branch
    %25 = sbr.rel (0) target = $region29
  $region28: #{apply.1} parent=0 // pred_region
    _
  $region29: #{apply.1} parent=0 // pred_fallthru
    _
  %v27 = vld [vmem:[%s6] sm:$0xff]
  %v28 = vld [vmem:[%s6 + $0x8] sm:$0xff]
  %v29 = vld [vmem:[%s6 + $0x10] sm:$0xff]
  %v30 = vlaneseq
  %v31 = vshrl.u32 %v30, 7
  %v32 = vsub.s32 4, %v31
  %v33 = vrot.slane %v29, %v32
  %v34 = vld [vmem:[%s0] sm:$0xf]
  %v35 = vld [vmem:[%s0 + $0x4] sm:$0xf]
  %v36 = vld [vmem:[%s0 + $0x8] sm:$0xf]
  %v37 = vld [vmem:[%s0 + $0xc] sm:$0xf]
  %v38 = vld [vmem:[%s0 + $0x10] sm:$0xf]
  %v39 = vld [vmem:[%s0 + $0x14] sm:$0xf]
  %v40 = vld [vmem:[%s0 + $0x18] sm:$0xf]
  %v41 = vld [vmem:[%s0 + $0x1c] sm:$0xf]
  %v42 = vld [vmem:[%s2] sm:$0xf]
  %v43 = vld [vmem:[%s2 + $0x4] sm:$0xf]
  %v44 = vlaneseq
  %v45 = vshrl.u32 %v44, 7
  %v46 = vsub.s32 0, %v45
  %v47 = vrot.slane %v27, %v46
  %v56 = vunpack.c.l.b16 %v34
  %v57 = vunpack.c.l.b16 %v35
  %v58 = vunpack.c.l.b16 %v36
  %v59 = vunpack.c.l.b16 %v37
  %v60 = vunpack.c.l.b16 %v38
  %v61 = vunpack.c.l.b16 %v39
  %v62 = vunpack.c.l.b16 %v40
  %v63 = vunpack.c.l.b16 %v41
  %v64 = vpack.c.b16 %v57, %v56
  %v65 = vpack.c.b16 %v59, %v58
  %v66 = vpack.c.b16 %v61, %v60
  %v67 = vpack.c.b16 %v63, %v62
  %v70 = vunpack.c.l.b16 %v42
  %v71 = vunpack.c.l.b16 %v43
  %v72 = vpack.c.b16 %v71, %v70
  %vm74 = vcmask 130048
  %v76 = vsel %vm74, %v64, 0
  %v79 = vsel %vm74, %v65, 0
  %v82 = vsel %vm74, %v66, 0
  %v85 = vsel %vm74, %v67, 0
  %87 = vmatprep.subr.bf16.mxu0 0
  %88 = vmatpush1.bf16.msra.mxu0 %v72
  %89 = vmatprep.subr.bf16.mxu0 0
  %90 = vmatpush1.bf16.msra.mxu0 0
  %91 = vmatprep.subr.bf16.mxu0 0
  %92 = vmatpush1.bf16.msra.mxu0 0
  %93 = vmatprep.subr.bf16.mxu0 0
  %94 = vmatpush1.bf16.msra.mxu0 0
  %95 = vmatprep.subr.bf16.mxu0 0
  %96 = vmatpush1.bf16.msra.mxu0 0
  %97 = vmatprep.subr.bf16.mxu0 0
  %98 = vmatpush1.bf16.msra.mxu0 0
  %99 = vmatprep.subr.bf16.mxu0 0
  %100 = vmatpush1.bf16.msra.mxu0 0
  %101 = vmatprep.subr.bf16.mxu0 0
  %102 = vmatpush1.bf16.msra.mxu0 0
  %103 = vmatprep.subr.bf16.mxu0 0
  %104 = vmatpush1.bf16.msra.mxu0 0
  %105 = vmatprep.subr.bf16.mxu0 0
  %106 = vmatpush1.bf16.msra.mxu0 0
  %107 = vmatprep.subr.bf16.mxu0 0
  %108 = vmatpush1.bf16.msra.mxu0 0
  %109 = vmatprep.subr.bf16.mxu0 0
  %110 = vmatpush1.bf16.msra.mxu0 0
  %111 = vmatprep.subr.bf16.mxu0 0
  %112 = vmatpush1.bf16.msra.mxu0 0
  %113 = vmatprep.subr.bf16.mxu0 0
  %114 = vmatpush1.bf16.msra.mxu0 0
  %115 = vmatprep.subr.bf16.mxu0 0
  %116 = vmatpush1.bf16.msra.mxu0 0
  %117 = vmatprep.subr.bf16.mxu0 0
  %118 = vmatpush1.bf16.msra.mxu0 0
  %119 = vmatprep.mubr.bf16.mxu0 0
  %120 = vmatmul.mubr.bf16.gmra.mrb[0].mxu0 %v76
  %v121 = vpop.f32.mrb[0].mxu0
  %v122 = vadd.f32 %v47, %v121
  %v123 = vpop.f32.mrb[0].mxu0
  %v124 = vpop.f32.mrb[0].mxu0
  %v125 = vadd.f32 %v47, %v124
  %v126 = vpop.f32.mrb[0].mxu0
  %127 = vmatprep.mubr.bf16.mxu0 0
  %128 = vmatmul.mubr.bf16.gmra.mrb[0].mxu0 %v79
  %v129 = vpop.f32.mrb[0].mxu0
  %v130 = vadd.f32 %v47, %v129
  %v131 = vpop.f32.mrb[0].mxu0
  %v132 = vpop.f32.mrb[0].mxu0
  %v133 = vadd.f32 %v47, %v132
  %v134 = vpop.f32.mrb[0].mxu0
  %135 = vmatprep.mubr.bf16.mxu0 0
  %136 = vmatmul.mubr.bf16.gmra.mrb[0].mxu0 %v82
  %v137 = vpop.f32.mrb[0].mxu0
  %v138 = vadd.f32 %v47, %v137
  %v139 = vpop.f32.mrb[0].mxu0
  %v140 = vpop.f32.mrb[0].mxu0
  %v141 = vadd.f32 %v47, %v140
  %v142 = vpop.f32.mrb[0].mxu0
  %143 = vmatprep.mubr.bf16.mxu0 0
  %144 = vmatmul.mubr.bf16.gmra.mrb[0].mxu0 %v85
  %v145 = vpop.f32.mrb[0].mxu0
  %v146 = vadd.f32 %v47, %v145
  %v147 = vpop.f32.mrb[0].mxu0
  %v148 = vpop.f32.mrb[0].mxu0
  %v149 = vadd.f32 %v47, %v148
  %v150 = vpop.f32.mrb[0].mxu0
  %151 = vdwg.mxu0
  %v152 = vmax.f32 %v122, 0.0
  %v153 = vmax.f32 %v125, 0.0
  %v154 = vmax.f32 %v130, 0.0
  %v155 = vmax.f32 %v133, 0.0
  %v156 = vmax.f32 %v138, 0.0
  %v157 = vmax.f32 %v141, 0.0
  %v158 = vmax.f32 %v146, 0.0
  %v159 = vmax.f32 %v149, 0.0
  %v160 = vpack.c.bf16 %v153, %v152
  %v161 = vpack.c.bf16 %v155, %v154
  %v162 = vpack.c.bf16 %v157, %v156
  %v163 = vpack.c.bf16 %v159, %v158
  %v164 = vld [vmem:[%s3] sm:$0xff]
  %v165 = vld [vmem:[%s3 + $0x8] sm:$0xff]
  %v166 = vld [vmem:[%s3 + $0x10] sm:$0xff]
  %v167 = vld [vmem:[%s3 + $0x18] sm:$0xff]
  %v168 = vld [vmem:[%s3 + $0x20] sm:$0xff]
  %v169 = vld [vmem:[%s3 + $0x28] sm:$0xff]
  %v170 = vld [vmem:[%s3 + $0x30] sm:$0xff]
  %v171 = vld [vmem:[%s3 + $0x38] sm:$0xff]
  %v172 = vld [vmem:[%s3 + $0x40] sm:$0xff]
  %v173 = vld [vmem:[%s3 + $0x48] sm:$0xff]
  %v174 = vld [vmem:[%s3 + $0x50] sm:$0xff]
  %v175 = vld [vmem:[%s3 + $0x58] sm:$0xff]
  %v176 = vld [vmem:[%s3 + $0x60] sm:$0xff]
  %v177 = vld [vmem:[%s3 + $0x68] sm:$0xff]
  %v178 = vld [vmem:[%s3 + $0x70] sm:$0xff]
  %v179 = vld [vmem:[%s3 + $0x78] sm:$0xff]
  %v180 = vlaneseq
  %v181 = vshrl.u32 %v180, 7
  %v182 = vsub.s32 1, %v181
  %v183 = vrot.slane %v27, %v182
  %v184 = vlaneseq
  %v185 = vshrl.u32 %v184, 7
  %v186 = vsub.s32 1, %v185
  %v187 = vrot.slane %v28, %v186
  %v204 = vunpack.c.l.b16 %v164
  %v205 = vunpack.c.h.b16 %v164
  %v206 = vunpack.c.l.b16 %v165
  %v207 = vunpack.c.h.b16 %v165
  %v208 = vunpack.c.l.b16 %v166
  %v209 = vunpack.c.h.b16 %v166
  %v210 = vunpack.c.l.b16 %v167
  %v211 = vunpack.c.h.b16 %v167
  %v212 = vunpack.c.l.b16 %v168
  %v213 = vunpack.c.h.b16 %v168
  %v214 = vunpack.c.l.b16 %v169
  %v215 = vunpack.c.h.b16 %v169
  %v216 = vunpack.c.l.b16 %v170
  %v217 = vunpack.c.h.b16 %v170
  %v218 = vunpack.c.l.b16 %v171
  %v219 = vunpack.c.h.b16 %v171
  %v220 = vunpack.c.l.b16 %v172
  %v221 = vunpack.c.h.b16 %v172
  %v222 = vunpack.c.l.b16 %v173
  %v223 = vunpack.c.h.b16 %v173
  %v224 = vunpack.c.l.b16 %v174
  %v225 = vunpack.c.h.b16 %v174
  %v226 = vunpack.c.l.b16 %v175
  %v227 = vunpack.c.h.b16 %v175
  %v228 = vunpack.c.l.b16 %v176
  %v229 = vunpack.c.h.b16 %v176
  %v230 = vunpack.c.l.b16 %v177
  %v231 = vunpack.c.h.b16 %v177
  %v232 = vunpack.c.l.b16 %v178
  %v233 = vunpack.c.h.b16 %v178
  %v234 = vunpack.c.l.b16 %v179
  %v235 = vunpack.c.h.b16 %v179
  %v236 = vpack.c.b16 %v206, %v204
  %v237 = vpack.c.b16 %v207, %v205
  %v238 = vpack.c.b16 %v210, %v208
  %v239 = vpack.c.b16 %v211, %v209
  %v240 = vpack.c.b16 %v214, %v212
  %v241 = vpack.c.b16 %v215, %v213
  %v242 = vpack.c.b16 %v218, %v216
  %v243 = vpack.c.b16 %v219, %v217
  %v244 = vpack.c.b16 %v222, %v220
  %v245 = vpack.c.b16 %v223, %v221
  %v246 = vpack.c.b16 %v226, %v224
  %v247 = vpack.c.b16 %v227, %v225
  %v248 = vpack.c.b16 %v230, %v228
  %v249 = vpack.c.b16 %v231, %v229
  %v250 = vpack.c.b16 %v234, %v232
  %v251 = vpack.c.b16 %v235, %v233
  %268 = vmatprep.subr.bf16.mxu0 %v237
  %269 = vmatpush1.bf16.msra.mxu0 %v236
  %270 = vmatprep.subr.bf16.mxu0 %v239
  %271 = vmatpush1.bf16.msra.mxu0 %v238
  %272 = vmatprep.subr.bf16.mxu0 %v241
  %273 = vmatpush1.bf16.msra.mxu0 %v240
  %274 = vmatprep.subr.bf16.mxu0 %v243
  %275 = vmatpush1.bf16.msra.mxu0 %v242
  %276 = vmatprep.subr.bf16.mxu0 %v245
  %277 = vmatpush1.bf16.msra.mxu0 %v244
  %278 = vmatprep.subr.bf16.mxu0 %v247
  %279 = vmatpush1.bf16.msra.mxu0 %v246
  %280 = vmatprep.subr.bf16.mxu0 %v249
  %281 = vmatpush1.bf16.msra.mxu0 %v248
  %282 = vmatprep.subr.bf16.mxu0 %v251
  %283 = vmatpush1.bf16.msra.mxu0 %v250
  %284 = vmatprep.subr.bf16.mxu0 0
  %285 = vmatpush1.bf16.msra.mxu0 0
  %286 = vmatprep.subr.bf16.mxu0 0
  %287 = vmatpush1.bf16.msra.mxu0 0
  %288 = vmatprep.subr.bf16.mxu0 0
  %289 = vmatpush1.bf16.msra.mxu0 0
  %290 = vmatprep.subr.bf16.mxu0 0
  %291 = vmatpush1.bf16.msra.mxu0 0
  %292 = vmatprep.subr.bf16.mxu0 0
  %293 = vmatpush1.bf16.msra.mxu0 0
  %294 = vmatprep.subr.bf16.mxu0 0
  %295 = vmatpush1.bf16.msra.mxu0 0
  %296 = vmatprep.subr.bf16.mxu0 0
  %297 = vmatpush1.bf16.msra.mxu0 0
  %298 = vmatprep.subr.bf16.mxu0 0
  %299 = vmatpush1.bf16.msra.mxu0 0
  %300 = vmatprep.mubr.bf16.mxu0 0
  %301 = vmatmul.mubr.bf16.gmra.mrb[0].mxu0 %v160
  %v302 = vpop.f32.mrb[0].mxu0
  %v303 = vadd.f32 %v183, %v302
  %v304 = vpop.f32.mrb[0].mxu0
  %v305 = vadd.f32 %v187, %v304
  %v306 = vpop.f32.mrb[0].mxu0
  %v307 = vadd.f32 %v183, %v306
  %v308 = vpop.f32.mrb[0].mxu0
  %v309 = vadd.f32 %v187, %v308
  %310 = vmatprep.mubr.bf16.mxu0 0
  %311 = vmatmul.mubr.bf16.gmra.mrb[0].mxu0 %v161
  %v312 = vpop.f32.mrb[0].mxu0
  %v313 = vadd.f32 %v183, %v312
  %v314 = vpop.f32.mrb[0].mxu0
  %v315 = vadd.f32 %v187, %v314
  %v316 = vpop.f32.mrb[0].mxu0
  %v317 = vadd.f32 %v183, %v316
  %v318 = vpop.f32.mrb[0].mxu0
  %v319 = vadd.f32 %v187, %v318
  %320 = vmatprep.mubr.bf16.mxu0 0
  %321 = vmatmul.mubr.bf16.gmra.mrb[0].mxu0 %v162
  %v322 = vpop.f32.mrb[0].mxu0
  %v323 = vadd.f32 %v183, %v322
  %v324 = vpop.f32.mrb[0].mxu0
  %v325 = vadd.f32 %v187, %v324
  %v326 = vpop.f32.mrb[0].mxu0
  %v327 = vadd.f32 %v183, %v326
  %v328 = vpop.f32.mrb[0].mxu0
  %v329 = vadd.f32 %v187, %v328
  %330 = vmatprep.mubr.bf16.mxu0 0
  %331 = vmatmul.mubr.bf16.gmra.mrb[0].mxu0 %v163
  %v332 = vpop.f32.mrb[0].mxu0
  %v333 = vadd.f32 %v183, %v332
  %v334 = vpop.f32.mrb[0].mxu0
  %v335 = vadd.f32 %v187, %v334
  %v336 = vpop.f32.mrb[0].mxu0
  %v337 = vadd.f32 %v183, %v336
  %v338 = vpop.f32.mrb[0].mxu0
  %v339 = vadd.f32 %v187, %v338
  %340 = vdwg.mxu0
  %v341 = vmax.f32 %v303, 0.0
  %v342 = vmax.f32 %v305, 0.0
  %v343 = vmax.f32 %v307, 0.0
  %v344 = vmax.f32 %v309, 0.0
  %v345 = vmax.f32 %v313, 0.0
  %v346 = vmax.f32 %v315, 0.0
  %v347 = vmax.f32 %v317, 0.0
  %v348 = vmax.f32 %v319, 0.0
  %v349 = vmax.f32 %v323, 0.0
  %v350 = vmax.f32 %v325, 0.0
  %v351 = vmax.f32 %v327, 0.0
  %v352 = vmax.f32 %v329, 0.0
  %v353 = vmax.f32 %v333, 0.0
  %v354 = vmax.f32 %v335, 0.0
  %v355 = vmax.f32 %v337, 0.0
  %v356 = vmax.f32 %v339, 0.0
  %v357 = vpack.c.bf16 %v343, %v341
  %v358 = vpack.c.bf16 %v344, %v342
  %v359 = vpack.c.bf16 %v347, %v345
  %v360 = vpack.c.bf16 %v348, %v346
  %v361 = vpack.c.bf16 %v351, %v349
  %v362 = vpack.c.bf16 %v352, %v350
  %v363 = vpack.c.bf16 %v355, %v353
  %v364 = vpack.c.bf16 %v356, %v354
  %v365 = vld [vmem:[%s4] sm:$0xff]
  %v366 = vld [vmem:[%s4 + $0x8] sm:$0xf]
  %v367 = vld [vmem:[%s4 + $0xc] sm:$0xff]
  %v368 = vld [vmem:[%s4 + $0x14] sm:$0xf]
  %v369 = vld [vmem:[%s4 + $0x18] sm:$0xff]
  %v370 = vld [vmem:[%s4 + $0x20] sm:$0xf]
  %v371 = vld [vmem:[%s4 + $0x24] sm:$0xff]
  %v372 = vld [vmem:[%s4 + $0x2c] sm:$0xf]
  %v373 = vld [vmem:[%s4 + $0x30] sm:$0xff]
  %v374 = vld [vmem:[%s4 + $0x38] sm:$0xf]
  %v375 = vld [vmem:[%s4 + $0x3c] sm:$0xff]
  %v376 = vld [vmem:[%s4 + $0x44] sm:$0xf]
  %v377 = vld [vmem:[%s4 + $0x48] sm:$0xff]
  %v378 = vld [vmem:[%s4 + $0x50] sm:$0xf]
  %v379 = vld [vmem:[%s4 + $0x54] sm:$0xff]
  %v380 = vld [vmem:[%s4 + $0x5c] sm:$0xf]
  %v381 = vld [vmem:[%s4 + $0x60] sm:$0xff]
  %v382 = vld [vmem:[%s4 + $0x68] sm:$0xf]
  %v383 = vld [vmem:[%s4 + $0x6c] sm:$0xff]
  %v384 = vld [vmem:[%s4 + $0x74] sm:$0xf]
  %v385 = vld [vmem:[%s4 + $0x78] sm:$0xff]
  %v386 = vld [vmem:[%s4 + $0x80] sm:$0xf]
  %v387 = vld [vmem:[%s4 + $0x84] sm:$0xff]
  %v388 = vld [vmem:[%s4 + $0x8c] sm:$0xf]
  %v389 = vld [vmem:[%s4 + $0x90] sm:$0xff]
  %v390 = vld [vmem:[%s4 + $0x98] sm:$0xf]
  %v391 = vld [vmem:[%s4 + $0x9c] sm:$0xff]
  %v392 = vld [vmem:[%s4 + $0xa4] sm:$0xf]
  %v393 = vld [vmem:[%s4 + $0xa8] sm:$0xff]
  %v394 = vld [vmem:[%s4 + $0xb0] sm:$0xf]
  %v395 = vld [vmem:[%s4 + $0xb4] sm:$0xff]
  %v396 = vld [vmem:[%s4 + $0xbc] sm:$0xf]
  %v397 = vld [vmem:[%s4 + $0xc0] sm:$0xff]
  %v398 = vld [vmem:[%s4 + $0xc8] sm:$0xf]
  %v399 = vld [vmem:[%s4 + $0xcc] sm:$0xff]
  %v400 = vld [vmem:[%s4 + $0xd4] sm:$0xf]
  %v401 = vld [vmem:[%s4 + $0xd8] sm:$0xff]
  %v402 = vld [vmem:[%s4 + $0xe0] sm:$0xf]
  %v403 = vld [vmem:[%s4 + $0xe4] sm:$0xff]
  %v404 = vld [vmem:[%s4 + $0xec] sm:$0xf]
  %v405 = vld [vmem:[%s4 + $0xf0] sm:$0xff]
  %v406 = vld [vmem:[%s4 + $0xf8] sm:$0xf]
  %v407 = vld [vmem:[%s4 + $0xfc] sm:$0xff]
  %v408 = vld [vmem:[%s4 + $0x104] sm:$0xf]
  %v409 = vld [vmem:[%s4 + $0x108] sm:$0xff]
  %v410 = vld [vmem:[%s4 + $0x110] sm:$0xf]
  %v411 = vld [vmem:[%s4 + $0x114] sm:$0xff]
  %v412 = vld [vmem:[%s4 + $0x11c] sm:$0xf]
  %v413 = vld [vmem:[%s4 + $0x120] sm:$0xff]
  %v414 = vld [vmem:[%s4 + $0x128] sm:$0xf]
  %v415 = vld [vmem:[%s4 + $0x12c] sm:$0xff]
  %v416 = vld [vmem:[%s4 + $0x134] sm:$0xf]
  %v417 = vld [vmem:[%s4 + $0x138] sm:$0xff]
  %v418 = vld [vmem:[%s4 + $0x140] sm:$0xf]
  %v419 = vld [vmem:[%s4 + $0x144] sm:$0xff]
  %v420 = vld [vmem:[%s4 + $0x14c] sm:$0xf]
  %v421 = vld [vmem:[%s4 + $0x150] sm:$0xff]
  %v422 = vld [vmem:[%s4 + $0x158] sm:$0xf]
  %v423 = vld [vmem:[%s4 + $0x15c] sm:$0xff]
  %v424 = vld [vmem:[%s4 + $0x164] sm:$0xf]
  %v425 = vld [vmem:[%s4 + $0x168] sm:$0xff]
  %v426 = vld [vmem:[%s4 + $0x170] sm:$0xf]
  %v427 = vld [vmem:[%s4 + $0x174] sm:$0xff]
  %v428 = vld [vmem:[%s4 + $0x17c] sm:$0xf]
  %v429 = vld [vmem:[%s1] sm:$0xff]
  %v430 = vld [vmem:[%s1 + $0x8] sm:$0xff]
  %v431 = vld [vmem:[%s1 + $0x10] sm:$0xff]
  %v432 = vld [vmem:[%s1 + $0x18] sm:$0xff]
  %v433 = vld [vmem:[%s1 + $0x20] sm:$0xff]
  %v434 = vld [vmem:[%s1 + $0x28] sm:$0xff]
  %v435 = vld [vmem:[%s1 + $0x30] sm:$0xff]
  %v436 = vld [vmem:[%s1 + $0x38] sm:$0xff]
  %438 = vset.pattern.permute.xlu0 0
  %439 = vperm.xlu0 %438, %v429
  %v440 = vpop.permute.xlu0 %439
  %443 = vset.pattern.permute.xlu0 0
  %444 = vperm.xlu0 %443, %v430
  %v445 = vpop.permute.xlu0 %444
  %448 = vset.pattern.permute.xlu0 0
  %449 = vperm.xlu0 %448, %v431
  %v450 = vpop.permute.xlu0 %449
  %453 = vset.pattern.permute.xlu0 0
  %454 = vperm.xlu0 %453, %v432
  %v455 = vpop.permute.xlu0 %454
  %458 = vset.pattern.permute.xlu0 0
  %459 = vperm.xlu0 %458, %v433
  %v460 = vpop.permute.xlu0 %459
  %463 = vset.pattern.permute.xlu0 0
  %464 = vperm.xlu0 %463, %v434
  %v465 = vpop.permute.xlu0 %464
  %468 = vset.pattern.permute.xlu0 0
  %469 = vperm.xlu0 %468, %v435
  %v470 = vpop.permute.xlu0 %469
  %473 = vset.pattern.permute.xlu0 0
  %474 = vperm.xlu0 %473, %v436
  %v475 = vpop.permute.xlu0 %474
  %v477 = vlaneseq
  %v478 = vshrl.u32 %v477, 7
  %v479 = vsub.s32 3, %v478
  %v480 = vrot.slane %v27, %v479
  %v481 = vlaneseq
  %v482 = vshrl.u32 %v481, 7
  %v483 = vsub.s32 3, %v482
  %v484 = vrot.slane %v28, %v483
  %v485 = vlaneseq
  %v486 = vshrl.u32 %v485, 7
  %v487 = vsub.s32 3, %v486
  %v488 = vrot.slane %v29, %v487
  %v489 = vmul.f32 %v440, %v480
  %v490 = vmul.f32 %v440, %v484
  %v491 = vmul.f32 %v440, %v488
  %v492 = vmul.f32 %v445, %v480
  %v493 = vmul.f32 %v445, %v484
  %v494 = vmul.f32 %v445, %v488
  %v495 = vmul.f32 %v450, %v480
  %v496 = vmul.f32 %v450, %v484
  %v497 = vmul.f32 %v450, %v488
  %v498 = vmul.f32 %v455, %v480
  %v499 = vmul.f32 %v455, %v484
  %v500 = vmul.f32 %v455, %v488
  %v501 = vmul.f32 %v460, %v480
  %v502 = vmul.f32 %v460, %v484
  %v503 = vmul.f32 %v460, %v488
  %v504 = vmul.f32 %v465, %v480
  %v505 = vmul.f32 %v465, %v484
  %v506 = vmul.f32 %v465, %v488
  %v507 = vmul.f32 %v470, %v480
  %v508 = vmul.f32 %v470, %v484
  %v509 = vmul.f32 %v470, %v488
  %v510 = vmul.f32 %v475, %v480
  %v511 = vmul.f32 %v475, %v484
  %v512 = vmul.f32 %v475, %v488
  %v577 = vunpack.c.l.b16 %v365
  %v578 = vunpack.c.h.b16 %v365
  %v579 = vunpack.c.l.b16 %v366
  %v580 = vunpack.c.l.b16 %v367
  %v581 = vunpack.c.h.b16 %v367
  %v582 = vunpack.c.l.b16 %v368
  %v583 = vunpack.c.l.b16 %v369
  %v584 = vunpack.c.h.b16 %v369
  %v585 = vunpack.c.l.b16 %v370
  %v586 = vunpack.c.l.b16 %v371
  %v587 = vunpack.c.h.b16 %v371
  %v588 = vunpack.c.l.b16 %v372
  %v589 = vunpack.c.l.b16 %v373
  %v590 = vunpack.c.h.b16 %v373
  %v591 = vunpack.c.l.b16 %v374
  %v592 = vunpack.c.l.b16 %v375
  %v593 = vunpack.c.h.b16 %v375
  %v594 = vunpack.c.l.b16 %v376
  %v595 = vunpack.c.l.b16 %v377
  %v596 = vunpack.c.h.b16 %v377
  %v597 = vunpack.c.l.b16 %v378
  %v598 = vunpack.c.l.b16 %v379
  %v599 = vunpack.c.h.b16 %v379
  %v600 = vunpack.c.l.b16 %v380
  %v601 = vunpack.c.l.b16 %v381
  %v602 = vunpack.c.h.b16 %v381
  %v603 = vunpack.c.l.b16 %v382
  %v604 = vunpack.c.l.b16 %v383
  %v605 = vunpack.c.h.b16 %v383
  %v606 = vunpack.c.l.b16 %v384
  %v607 = vunpack.c.l.b16 %v385
  %v608 = vunpack.c.h.b16 %v385
  %v609 = vunpack.c.l.b16 %v386
  %v610 = vunpack.c.l.b16 %v387
  %v611 = vunpack.c.h.b16 %v387
  %v612 = vunpack.c.l.b16 %v388
  %v613 = vunpack.c.l.b16 %v389
  %v614 = vunpack.c.h.b16 %v389
  %v615 = vunpack.c.l.b16 %v390
  %v616 = vunpack.c.l.b16 %v391
  %v617 = vunpack.c.h.b16 %v391
  %v618 = vunpack.c.l.b16 %v392
  %v619 = vunpack.c.l.b16 %v393
  %v620 = vunpack.c.h.b16 %v393
  %v621 = vunpack.c.l.b16 %v394
  %v622 = vunpack.c.l.b16 %v395
  %v623 = vunpack.c.h.b16 %v395
  %v624 = vunpack.c.l.b16 %v396
  %v625 = vunpack.c.l.b16 %v397
  %v626 = vunpack.c.h.b16 %v397
  %v627 = vunpack.c.l.b16 %v398
  %v628 = vunpack.c.l.b16 %v399
  %v629 = vunpack.c.h.b16 %v399
  %v630 = vunpack.c.l.b16 %v400
  %v631 = vunpack.c.l.b16 %v401
  %v632 = vunpack.c.h.b16 %v401
  %v633 = vunpack.c.l.b16 %v402
  %v634 = vunpack.c.l.b16 %v403
  %v635 = vunpack.c.h.b16 %v403
  %v636 = vunpack.c.l.b16 %v404
  %v637 = vunpack.c.l.b16 %v405
  %v638 = vunpack.c.h.b16 %v405
  %v639 = vunpack.c.l.b16 %v406
  %v640 = vunpack.c.l.b16 %v407
  %v641 = vunpack.c.h.b16 %v407
  %v642 = vunpack.c.l.b16 %v408
  %v643 = vunpack.c.l.b16 %v409
  %v644 = vunpack.c.h.b16 %v409
  %v645 = vunpack.c.l.b16 %v410
  %v646 = vunpack.c.l.b16 %v411
  %v647 = vunpack.c.h.b16 %v411
  %v648 = vunpack.c.l.b16 %v412
  %v649 = vunpack.c.l.b16 %v413
  %v650 = vunpack.c.h.b16 %v413
  %v651 = vunpack.c.l.b16 %v414
  %v652 = vunpack.c.l.b16 %v415
  %v653 = vunpack.c.h.b16 %v415
  %v654 = vunpack.c.l.b16 %v416
  %v655 = vunpack.c.l.b16 %v417
  %v656 = vunpack.c.h.b16 %v417
  %v657 = vunpack.c.l.b16 %v418
  %v658 = vunpack.c.l.b16 %v419
  %v659 = vunpack.c.h.b16 %v419
  %v660 = vunpack.c.l.b16 %v420
  %v661 = vunpack.c.l.b16 %v421
  %v662 = vunpack.c.h.b16 %v421
  %v663 = vunpack.c.l.b16 %v422
  %v664 = vunpack.c.l.b16 %v423
  %v665 = vunpack.c.h.b16 %v423
  %v666 = vunpack.c.l.b16 %v424
  %v667 = vunpack.c.l.b16 %v425
  %v668 = vunpack.c.h.b16 %v425
  %v669 = vunpack.c.l.b16 %v426
  %v670 = vunpack.c.l.b16 %v427
  %v671 = vunpack.c.h.b16 %v427
  %v672 = vunpack.c.l.b16 %v428
  %v673 = vpack.c.b16 %v580, %v577
  %v674 = vpack.c.b16 %v581, %v578
  %v675 = vpack.c.b16 %v582, %v579
  %v676 = vpack.c.b16 %v586, %v583
  %v677 = vpack.c.b16 %v587, %v584
  %v678 = vpack.c.b16 %v588, %v585
  %v679 = vpack.c.b16 %v592, %v589
  %v680 = vpack.c.b16 %v593, %v590
  %v681 = vpack.c.b16 %v594, %v591
  %v682 = vpack.c.b16 %v598, %v595
  %v683 = vpack.c.b16 %v599, %v596
  %v684 = vpack.c.b16 %v600, %v597
  %v685 = vpack.c.b16 %v604, %v601
  %v686 = vpack.c.b16 %v605, %v602
  %v687 = vpack.c.b16 %v606, %v603
  %v688 = vpack.c.b16 %v610, %v607
  %v689 = vpack.c.b16 %v611, %v608
  %v690 = vpack.c.b16 %v612, %v609
  %v691 = vpack.c.b16 %v616, %v613
  %v692 = vpack.c.b16 %v617, %v614
  %v693 = vpack.c.b16 %v618, %v615
  %v694 = vpack.c.b16 %v622, %v619
  %v695 = vpack.c.b16 %v623, %v620
  %v696 = vpack.c.b16 %v624, %v621
  %v697 = vpack.c.b16 %v628, %v625
  %v698 = vpack.c.b16 %v629, %v626
  %v699 = vpack.c.b16 %v630, %v627
  %v700 = vpack.c.b16 %v634, %v631
  %v701 = vpack.c.b16 %v635, %v632
  %v702 = vpack.c.b16 %v636, %v633
  %v703 = vpack.c.b16 %v640, %v637
  %v704 = vpack.c.b16 %v641, %v638
  %v705 = vpack.c.b16 %v642, %v639
  %v706 = vpack.c.b16 %v646, %v643
  %v707 = vpack.c.b16 %v647, %v644
  %v708 = vpack.c.b16 %v648, %v645
  %v709 = vpack.c.b16 %v652, %v649
  %v710 = vpack.c.b16 %v653, %v650
  %v711 = vpack.c.b16 %v654, %v651
  %v712 = vpack.c.b16 %v658, %v655
  %v713 = vpack.c.b16 %v659, %v656
  %v714 = vpack.c.b16 %v660, %v657
  %v715 = vpack.c.b16 %v664, %v661
  %v716 = vpack.c.b16 %v665, %v662
  %v717 = vpack.c.b16 %v666, %v663
  %v718 = vpack.c.b16 %v670, %v667
  %v719 = vpack.c.b16 %v671, %v668
  %v720 = vpack.c.b16 %v672, %v669
  %769 = vmatprep.subr.bf16.mxu0 %v674
  %770 = vmatpush1.bf16.msra.mxu0 %v673
  %771 = vmatprep.subr.bf16.mxu0 %v677
  %772 = vmatpush1.bf16.msra.mxu0 %v676
  %773 = vmatprep.subr.bf16.mxu0 %v680
  %774 = vmatpush1.bf16.msra.mxu0 %v679
  %775 = vmatprep.subr.bf16.mxu0 %v683
  %776 = vmatpush1.bf16.msra.mxu0 %v682
  %777 = vmatprep.subr.bf16.mxu0 %v686
  %778 = vmatpush1.bf16.msra.mxu0 %v685
  %779 = vmatprep.subr.bf16.mxu0 %v689
  %780 = vmatpush1.bf16.msra.mxu0 %v688
  %781 = vmatprep.subr.bf16.mxu0 %v692
  %782 = vmatpush1.bf16.msra.mxu0 %v691
  %783 = vmatprep.subr.bf16.mxu0 %v695
  %784 = vmatpush1.bf16.msra.mxu0 %v694
  %785 = vmatprep.subr.bf16.mxu0 %v698
  %786 = vmatpush1.bf16.msra.mxu0 %v697
  %787 = vmatprep.subr.bf16.mxu0 %v701
  %788 = vmatpush1.bf16.msra.mxu0 %v700
  %789 = vmatprep.subr.bf16.mxu0 %v704
  %790 = vmatpush1.bf16.msra.mxu0 %v703
  %791 = vmatprep.subr.bf16.mxu0 %v707
  %792 = vmatpush1.bf16.msra.mxu0 %v706
  %793 = vmatprep.subr.bf16.mxu0 %v710
  %794 = vmatpush1.bf16.msra.mxu0 %v709
  %795 = vmatprep.subr.bf16.mxu0 %v713
  %796 = vmatpush1.bf16.msra.mxu0 %v712
  %797 = vmatprep.subr.bf16.mxu0 %v716
  %798 = vmatpush1.bf16.msra.mxu0 %v715
  %799 = vmatprep.subr.bf16.mxu0 %v719
  %800 = vmatpush1.bf16.msra.mxu0 %v718
  %801 = vmatprep.mubr.bf16.mxu0 %v358
  %802 = vmatmul.mubr.bf16.gmra.mrb[0].mxu0 %v357
  %v803 = vpop.f32.mrb[0].mxu0
  %v804 = vadd.f32 %v489, %v803
  %v805 = vpop.f32.mrb[0].mxu0
  %v806 = vadd.f32 %v490, %v805
  %v807 = vpop.f32.mrb[0].mxu0
  %v808 = vadd.f32 %v492, %v807
  %v809 = vpop.f32.mrb[0].mxu0
  %v810 = vadd.f32 %v493, %v809
  %811 = vmatprep.mubr.bf16.mxu0 %v360
  %812 = vmatmul.mubr.bf16.gmra.mrb[0].mxu0 %v359
  %v813 = vpop.f32.mrb[0].mxu0
  %v814 = vadd.f32 %v495, %v813
  %v815 = vpop.f32.mrb[0].mxu0
  %v816 = vadd.f32 %v496, %v815
  %v817 = vpop.f32.mrb[0].mxu0
  %v818 = vadd.f32 %v498, %v817
  %v819 = vpop.f32.mrb[0].mxu0
  %v820 = vadd.f32 %v499, %v819
  %821 = vmatprep.mubr.bf16.mxu0 %v362
  %822 = vmatmul.mubr.bf16.gmra.mrb[0].mxu0 %v361
  %v823 = vpop.f32.mrb[0].mxu0
  %v824 = vadd.f32 %v501, %v823
  %v825 = vpop.f32.mrb[0].mxu0
  %v826 = vadd.f32 %v502, %v825
  %v827 = vpop.f32.mrb[0].mxu0
  %v828 = vadd.f32 %v504, %v827
  %v829 = vpop.f32.mrb[0].mxu0
  %v830 = vadd.f32 %v505, %v829
  %831 = vmatprep.mubr.bf16.mxu0 %v364
  %832 = vmatmul.mubr.bf16.gmra.mrb[0].mxu0 %v363
  %v833 = vpop.f32.mrb[0].mxu0
  %v834 = vadd.f32 %v507, %v833
  %v835 = vpop.f32.mrb[0].mxu0
  %v836 = vadd.f32 %v508, %v835
  %v837 = vpop.f32.mrb[0].mxu0
  %v838 = vadd.f32 %v510, %v837
  %v839 = vpop.f32.mrb[0].mxu0
  %v840 = vadd.f32 %v511, %v839
  %841 = vdwg.mxu0
  %842 = vmatprep.subr.bf16.mxu0 0
  %843 = vmatpush1.bf16.msra.mxu0 %v675
  %844 = vmatprep.subr.bf16.mxu0 0
  %845 = vmatpush1.bf16.msra.mxu0 %v678
  %846 = vmatprep.subr.bf16.mxu0 0
  %847 = vmatpush1.bf16.msra.mxu0 %v681
  %848 = vmatprep.subr.bf16.mxu0 0
  %849 = vmatpush1.bf16.msra.mxu0 %v684
  %850 = vmatprep.subr.bf16.mxu0 0
  %851 = vmatpush1.bf16.msra.mxu0 %v687
  %852 = vmatprep.subr.bf16.mxu0 0
  %853 = vmatpush1.bf16.msra.mxu0 %v690
  %854 = vmatprep.subr.bf16.mxu0 0
  %855 = vmatpush1.bf16.msra.mxu0 %v693
  %856 = vmatprep.subr.bf16.mxu0 0
  %857 = vmatpush1.bf16.msra.mxu0 %v696
  %858 = vmatprep.subr.bf16.mxu0 0
  %859 = vmatpush1.bf16.msra.mxu0 %v699
  %860 = vmatprep.subr.bf16.mxu0 0
  %861 = vmatpush1.bf16.msra.mxu0 %v702
  %862 = vmatprep.subr.bf16.mxu0 0
  %863 = vmatpush1.bf16.msra.mxu0 %v705
  %864 = vmatprep.subr.bf16.mxu0 0
  %865 = vmatpush1.bf16.msra.mxu0 %v708
  %866 = vmatprep.subr.bf16.mxu0 0
  %867 = vmatpush1.bf16.msra.mxu0 %v711
  %868 = vmatprep.subr.bf16.mxu0 0
  %869 = vmatpush1.bf16.msra.mxu0 %v714
  %870 = vmatprep.subr.bf16.mxu0 0
  %871 = vmatpush1.bf16.msra.mxu0 %v717
  %872 = vmatprep.subr.bf16.mxu0 0
  %873 = vmatpush1.bf16.msra.mxu0 %v720
  %874 = vmatprep.mubr.bf16.mxu0 %v358
  %875 = vmatmul.mubr.bf16.gmra.mrb[0].mxu0 %v357
  %v876 = vpop.f32.mrb[0].mxu0
  %v877 = vadd.f32 %v491, %v876
  %v878 = vpop.f32.mrb[0].mxu0
  %v879 = vpop.f32.mrb[0].mxu0
  %v880 = vadd.f32 %v494, %v879
  %v881 = vpop.f32.mrb[0].mxu0
  %882 = vmatprep.mubr.bf16.mxu0 %v360
  %883 = vmatmul.mubr.bf16.gmra.mrb[0].mxu0 %v359
  %v884 = vpop.f32.mrb[0].mxu0
  %v885 = vadd.f32 %v497, %v884
  %v886 = vpop.f32.mrb[0].mxu0
  %v887 = vpop.f32.mrb[0].mxu0
  %v888 = vadd.f32 %v500, %v887
  %v889 = vpop.f32.mrb[0].mxu0
  %890 = vmatprep.mubr.bf16.mxu0 %v362
  %891 = vmatmul.mubr.bf16.gmra.mrb[0].mxu0 %v361
  %v892 = vpop.f32.mrb[0].mxu0
  %v893 = vadd.f32 %v503, %v892
  %v894 = vpop.f32.mrb[0].mxu0
  %v895 = vpop.f32.mrb[0].mxu0
  %v896 = vadd.f32 %v506, %v895
  %v897 = vpop.f32.mrb[0].mxu0
  %898 = vmatprep.mubr.bf16.mxu0 %v364
  %899 = vmatmul.mubr.bf16.gmra.mrb[0].mxu0 %v363
  %v900 = vpop.f32.mrb[0].mxu0
  %v901 = vadd.f32 %v509, %v900
  %v902 = vpop.f32.mrb[0].mxu0
  %v903 = vpop.f32.mrb[0].mxu0
  %v904 = vadd.f32 %v512, %v903
  %v905 = vpop.f32.mrb[0].mxu0
  %906 = vdwg.mxu0
  %v907 = vlaneseq
  %v908 = vshrl.u32 %v907, 7
  %v909 = vsub.s32 2, %v908
  %v910 = vrot.slane %v27, %v909
  %v911 = vlaneseq
  %v912 = vshrl.u32 %v911, 7
  %v913 = vsub.s32 2, %v912
  %v914 = vrot.slane %v28, %v913
  %v915 = vlaneseq
  %v916 = vshrl.u32 %v915, 7
  %v917 = vsub.s32 2, %v916
  %v918 = vrot.slane %v29, %v917
  %v919 = vadd.f32 %v804, %v910
  %v920 = vadd.f32 %v806, %v914
  %v921 = vadd.f32 %v877, %v918
  %v922 = vadd.f32 %v808, %v910
  %v923 = vadd.f32 %v810, %v914
  %v924 = vadd.f32 %v880, %v918
  %v925 = vadd.f32 %v814, %v910
  %v926 = vadd.f32 %v816, %v914
  %v927 = vadd.f32 %v885, %v918
  %v928 = vadd.f32 %v818, %v910
  %v929 = vadd.f32 %v820, %v914
  %v930 = vadd.f32 %v888, %v918
  %v931 = vadd.f32 %v824, %v910
  %v932 = vadd.f32 %v826, %v914
  %v933 = vadd.f32 %v893, %v918
  %v934 = vadd.f32 %v828, %v910
  %v935 = vadd.f32 %v830, %v914
  %v936 = vadd.f32 %v896, %v918
  %v937 = vadd.f32 %v834, %v910
  %v938 = vadd.f32 %v836, %v914
  %v939 = vadd.f32 %v901, %v918
  %v940 = vadd.f32 %v838, %v910
  %v941 = vadd.f32 %v840, %v914
  %v942 = vadd.f32 %v904, %v918
  %v943 = vld [vmem:[%s5] sm:$0xff]
  %v944 = vld [vmem:[%s5 + $0x8] sm:$0xf]
  %v945 = vld [vmem:[%s5 + $0xc] sm:$0xff]
  %v946 = vld [vmem:[%s5 + $0x14] sm:$0xf]
  %v947 = vld [vmem:[%s5 + $0x18] sm:$0xff]
  %v948 = vld [vmem:[%s5 + $0x20] sm:$0xf]
  %v949 = vld [vmem:[%s5 + $0x24] sm:$0xff]
  %v950 = vld [vmem:[%s5 + $0x2c] sm:$0xf]
  %v959 = vunpack.c.l.b16 %v943
  %v960 = vunpack.c.h.b16 %v943
  %v961 = vunpack.c.l.b16 %v944
  %v962 = vunpack.c.l.b16 %v945
  %v963 = vunpack.c.h.b16 %v945
  %v964 = vunpack.c.l.b16 %v946
  %v965 = vunpack.c.l.b16 %v947
  %v966 = vunpack.c.h.b16 %v947
  %v967 = vunpack.c.l.b16 %v948
  %v968 = vunpack.c.l.b16 %v949
  %v969 = vunpack.c.h.b16 %v949
  %v970 = vunpack.c.l.b16 %v950
  %v971 = vpack.c.b16 %v962, %v959
  %v972 = vpack.c.b16 %v963, %v960
  %v973 = vpack.c.b16 %v964, %v961
  %v974 = vpack.c.b16 %v968, %v965
  %v975 = vpack.c.b16 %v969, %v966
  %v976 = vpack.c.b16 %v970, %v967
  %vm983 = vcmask 261120
  %v985 = vsel %vm983, 0, 0
  %987 = vmatprep.subr.bf16.mxu0 %v972
  %988 = vmatpush1.bf16.msra.mxu0 %v971
  %989 = vmatprep.subr.bf16.mxu0 %v975
  %990 = vmatpush1.bf16.msra.mxu0 %v974
  %991 = vmatprep.subr.bf16.mxu0 0
  %992 = vmatpush1.bf16.msra.mxu0 0
  %993 = vmatprep.subr.bf16.mxu0 0
  %994 = vmatpush1.bf16.msra.mxu0 0
  %995 = vmatprep.subr.bf16.mxu0 0
  %996 = vmatpush1.bf16.msra.mxu0 0
  %997 = vmatprep.subr.bf16.mxu0 0
  %998 = vmatpush1.bf16.msra.mxu0 0
  %999 = vmatprep.subr.bf16.mxu0 0
  %1000 = vmatpush1.bf16.msra.mxu0 0
  %1001 = vmatprep.subr.bf16.mxu0 0
  %1002 = vmatpush1.bf16.msra.mxu0 0
  %1003 = vmatprep.subr.bf16.mxu0 0
  %1004 = vmatpush1.bf16.msra.mxu0 0
  %1005 = vmatprep.subr.bf16.mxu0 0
  %1006 = vmatpush1.bf16.msra.mxu0 0
  %1007 = vmatprep.subr.bf16.mxu0 0
  %1008 = vmatpush1.bf16.msra.mxu0 0
  %1009 = vmatprep.subr.bf16.mxu0 0
  %1010 = vmatpush1.bf16.msra.mxu0 0
  %1011 = vmatprep.subr.bf16.mxu0 0
  %1012 = vmatpush1.bf16.msra.mxu0 0
  %1013 = vmatprep.subr.bf16.mxu0 0
  %1014 = vmatpush1.bf16.msra.mxu0 0
  %1015 = vmatprep.subr.bf16.mxu0 0
  %1016 = vmatpush1.bf16.msra.mxu0 0
  %1017 = vmatprep.subr.bf16.mxu0 0
  %1018 = vmatpush1.bf16.msra.mxu0 0
  %1019 = vmatprep.mubr.bf16.mxu0 0
  %1020 = vmatmul.mubr.bf16.gmra.mrb[0].mxu0 %v985
  %v1021 = vpop.f32.mrb[0].mxu0
  %v1022 = vadd.f32 0.0, %v1021
  %v1023 = vpop.f32.mrb[0].mxu0
  %v1024 = vadd.f32 0.0, %v1023
  %v1025 = vpop.f32.mrb[0].mxu0
  %v1026 = vpop.f32.mrb[0].mxu0
  %1027 = vdwg.mxu0
  %1028 = vmatprep.subr.bf16.mxu0 0
  %1029 = vmatpush1.bf16.msra.mxu0 %v973
  %1030 = vmatprep.subr.bf16.mxu0 0
  %1031 = vmatpush1.bf16.msra.mxu0 %v976
  %1032 = vmatprep.subr.bf16.mxu0 0
  %1033 = vmatpush1.bf16.msra.mxu0 0
  %1034 = vmatprep.subr.bf16.mxu0 0
  %1035 = vmatpush1.bf16.msra.mxu0 0
  %1036 = vmatprep.subr.bf16.mxu0 0
  %1037 = vmatpush1.bf16.msra.mxu0 0
  %1038 = vmatprep.subr.bf16.mxu0 0
  %1039 = vmatpush1.bf16.msra.mxu0 0
  %1040 = vmatprep.subr.bf16.mxu0 0
  %1041 = vmatpush1.bf16.msra.mxu0 0
  %1042 = vmatprep.subr.bf16.mxu0 0
  %1043 = vmatpush1.bf16.msra.mxu0 0
  %1044 = vmatprep.subr.bf16.mxu0 0
  %1045 = vmatpush1.bf16.msra.mxu0 0
  %1046 = vmatprep.subr.bf16.mxu0 0
  %1047 = vmatpush1.bf16.msra.mxu0 0
  %1048 = vmatprep.subr.bf16.mxu0 0
  %1049 = vmatpush1.bf16.msra.mxu0 0
  %1050 = vmatprep.subr.bf16.mxu0 0
  %1051 = vmatpush1.bf16.msra.mxu0 0
  %1052 = vmatprep.subr.bf16.mxu0 0
  %1053 = vmatpush1.bf16.msra.mxu0 0
  %1054 = vmatprep.subr.bf16.mxu0 0
  %1055 = vmatpush1.bf16.msra.mxu0 0
  %1056 = vmatprep.subr.bf16.mxu0 0
  %1057 = vmatpush1.bf16.msra.mxu0 0
  %1058 = vmatprep.subr.bf16.mxu0 0
  %1059 = vmatpush1.bf16.msra.mxu0 0
  %1060 = vmatprep.mubr.bf16.mxu0 0
  %1061 = vmatmul.mubr.bf16.gmra.mrb[0].mxu0 %v985
  %v1062 = vpop.f32.mrb[0].mxu0
  %v1063 = vadd.f32 0.0, %v1062
  %v1064 = vpop.f32.mrb[0].mxu0
  %v1065 = vpop.f32.mrb[0].mxu0
  %v1066 = vpop.f32.mrb[0].mxu0
  %1067 = vdwg.mxu0
  %v1068 = vadd.f32 %v919, %v1022
  %v1069 = vxor.u32 %v1068, 2147483648
  %v1070 = vmul.f32 %v1069, 1.442695
  %v1071 = vpow.pop %v1070
  %v1072 = vadd.f32 %v1071, 1.0
  %v1073 = vrcp.pop %v1072
  %v1074 = vmul.f32 1.0, %v1073
  %v1075 = vadd.f32 %v920, %v1024
  %v1076 = vxor.u32 %v1075, 2147483648
  %v1077 = vmul.f32 %v1076, 1.442695
  %v1078 = vpow.pop %v1077
  %v1079 = vadd.f32 %v1078, 1.0
  %v1080 = vrcp.pop %v1079
  %v1081 = vmul.f32 1.0, %v1080
  %v1082 = vadd.f32 %v1063, %v33
  %v1083 = vmul.f32 %v1074, %v1082
  %v1084 = vadd.f32 %v921, %v1083
  %v1085 = vtanh.pop %v1084
  %v1086 = vsub.f32 1.0, %v1081
  %v1087 = vmul.f32 %v1086, %v1085
  %v1088 = vmul.f32 %v1081, 0.0
  %v1089 = vadd.f32 %v1087, %v1088
  %v1090 = vpack.c.bf16 %v1089, %v1089
  %v1092 = vsel %vm983, %v1090, 0
  %1094 = vmatprep.subr.bf16.mxu0 %v972
  %1095 = vmatpush1.bf16.msra.mxu0 %v971
  %1096 = vmatprep.subr.bf16.mxu0 %v975
  %1097 = vmatpush1.bf16.msra.mxu0 %v974
  %1098 = vmatprep.subr.bf16.mxu0 0
  %1099 = vmatpush1.bf16.msra.mxu0 0
  %1100 = vmatprep.subr.bf16.mxu0 0
  %1101 = vmatpush1.bf16.msra.mxu0 0
  %1102 = vmatprep.subr.bf16.mxu0 0
  %1103 = vmatpush1.bf16.msra.mxu0 0
  %1104 = vmatprep.subr.bf16.mxu0 0
  %1105 = vmatpush1.bf16.msra.mxu0 0
  %1106 = vmatprep.subr.bf16.mxu0 0
  %1107 = vmatpush1.bf16.msra.mxu0 0
  %1108 = vmatprep.subr.bf16.mxu0 0
  %1109 = vmatpush1.bf16.msra.mxu0 0
  %1110 = vmatprep.subr.bf16.mxu0 0
  %1111 = vmatpush1.bf16.msra.mxu0 0
  %1112 = vmatprep.subr.bf16.mxu0 0
  %1113 = vmatpush1.bf16.msra.mxu0 0
  %1114 = vmatprep.subr.bf16.mxu0 0
  %1115 = vmatpush1.bf16.msra.mxu0 0
  %1116 = vmatprep.subr.bf16.mxu0 0
  %1117 = vmatpush1.bf16.msra.mxu0 0
  %1118 = vmatprep.subr.bf16.mxu0 0
  %1119 = vmatpush1.bf16.msra.mxu0 0
  %1120 = vmatprep.subr.bf16.mxu0 0
  %1121 = vmatpush1.bf16.msra.mxu0 0
  %1122 = vmatprep.subr.bf16.mxu0 0
  %1123 = vmatpush1.bf16.msra.mxu0 0
  %1124 = vmatprep.subr.bf16.mxu0 0
  %1125 = vmatpush1.bf16.msra.mxu0 0
  %1126 = vmatprep.mubr.bf16.mxu0 0
  %1127 = vmatmul.mubr.bf16.gmra.mrb[0].mxu0 %v1092
  %v1128 = vpop.f32.mrb[0].mxu0
  %v1129 = vadd.f32 0.0, %v1128
  %v1130 = vpop.f32.mrb[0].mxu0
  %v1131 = vadd.f32 0.0, %v1130
  %v1132 = vpop.f32.mrb[0].mxu0
  %v1133 = vpop.f32.mrb[0].mxu0
  %1134 = vdwg.mxu0
  %1135 = vmatprep.subr.bf16.mxu0 0
  %1136 = vmatpush1.bf16.msra.mxu0 %v973
  %1137 = vmatprep.subr.bf16.mxu0 0
  %1138 = vmatpush1.bf16.msra.mxu0 %v976
  %1139 = vmatprep.subr.bf16.mxu0 0
  %1140 = vmatpush1.bf16.msra.mxu0 0
  %1141 = vmatprep.subr.bf16.mxu0 0
  %1142 = vmatpush1.bf16.msra.mxu0 0
  %1143 = vmatprep.subr.bf16.mxu0 0
  %1144 = vmatpush1.bf16.msra.mxu0 0
  %1145 = vmatprep.subr.bf16.mxu0 0
  %1146 = vmatpush1.bf16.msra.mxu0 0
  %1147 = vmatprep.subr.bf16.mxu0 0
  %1148 = vmatpush1.bf16.msra.mxu0 0
  %1149 = vmatprep.subr.bf16.mxu0 0
  %1150 = vmatpush1.bf16.msra.mxu0 0
  %1151 = vmatprep.subr.bf16.mxu0 0
  %1152 = vmatpush1.bf16.msra.mxu0 0
  %1153 = vmatprep.subr.bf16.mxu0 0
  %1154 = vmatpush1.bf16.msra.mxu0 0
  %1155 = vmatprep.subr.bf16.mxu0 0
  %1156 = vmatpush1.bf16.msra.mxu0 0
  %1157 = vmatprep.subr.bf16.mxu0 0
  %1158 = vmatpush1.bf16.msra.mxu0 0
  %1159 = vmatprep.subr.bf16.mxu0 0
  %1160 = vmatpush1.bf16.msra.mxu0 0
  %1161 = vmatprep.subr.bf16.mxu0 0
  %1162 = vmatpush1.bf16.msra.mxu0 0
  %1163 = vmatprep.subr.bf16.mxu0 0
  %1164 = vmatpush1.bf16.msra.mxu0 0
  %1165 = vmatprep.subr.bf16.mxu0 0
  %1166 = vmatpush1.bf16.msra.mxu0 0
  %1167 = vmatprep.mubr.bf16.mxu0 0
  %1168 = vmatmul.mubr.bf16.gmra.mrb[0].mxu0 %v1092
  %v1169 = vpop.f32.mrb[0].mxu0
  %v1170 = vadd.f32 0.0, %v1169
  %v1171 = vpop.f32.mrb[0].mxu0
  %v1172 = vpop.f32.mrb[0].mxu0
  %v1173 = vpop.f32.mrb[0].mxu0
  %1174 = vdwg.mxu0
  %v1175 = vadd.f32 %v922, %v1129
  %v1176 = vxor.u32 %v1175, 2147483648
  %v1177 = vmul.f32 %v1176, 1.442695
  %v1178 = vpow.pop %v1177
  %v1179 = vadd.f32 %v1178, 1.0
  %v1180 = vrcp.pop %v1179
  %v1181 = vmul.f32 1.0, %v1180
  %v1182 = vadd.f32 %v923, %v1131
  %v1183 = vxor.u32 %v1182, 2147483648
  %v1184 = vmul.f32 %v1183, 1.442695
  %v1185 = vpow.pop %v1184
  %v1186 = vadd.f32 %v1185, 1.0
  %v1187 = vrcp.pop %v1186
  %v1188 = vmul.f32 1.0, %v1187
  %v1189 = vadd.f32 %v1170, %v33
  %v1190 = vmul.f32 %v1181, %v1189
  %v1191 = vadd.f32 %v924, %v1190
  %v1192 = vtanh.pop %v1191
  %v1193 = vsub.f32 1.0, %v1188
  %v1194 = vmul.f32 %v1193, %v1192
  %v1195 = vmul.f32 %v1188, %v1089
  %v1196 = vadd.f32 %v1194, %v1195
  %v1197 = vpack.c.bf16 %v1196, %v1196
  %v1199 = vsel %vm983, %v1197, 0
  %1201 = vmatprep.subr.bf16.mxu0 %v972
  %1202 = vmatpush1.bf16.msra.mxu0 %v971
  %1203 = vmatprep.subr.bf16.mxu0 %v975
  %1204 = vmatpush1.bf16.msra.mxu0 %v974
  %1205 = vmatprep.subr.bf16.mxu0 0
  %1206 = vmatpush1.bf16.msra.mxu0 0
  %1207 = vmatprep.subr.bf16.mxu0 0
  %1208 = vmatpush1.bf16.msra.mxu0 0
  %1209 = vmatprep.subr.bf16.mxu0 0
  %1210 = vmatpush1.bf16.msra.mxu0 0
  %1211 = vmatprep.subr.bf16.mxu0 0
  %1212 = vmatpush1.bf16.msra.mxu0 0
  %1213 = vmatprep.subr.bf16.mxu0 0
  %1214 = vmatpush1.bf16.msra.mxu0 0
  %1215 = vmatprep.subr.bf16.mxu0 0
  %1216 = vmatpush1.bf16.msra.mxu0 0
  %1217 = vmatprep.subr.bf16.mxu0 0
  %1218 = vmatpush1.bf16.msra.mxu0 0
  %1219 = vmatprep.subr.bf16.mxu0 0
  %1220 = vmatpush1.bf16.msra.mxu0 0
  %1221 = vmatprep.subr.bf16.mxu0 0
  %1222 = vmatpush1.bf16.msra.mxu0 0
  %1223 = vmatprep.subr.bf16.mxu0 0
  %1224 = vmatpush1.bf16.msra.mxu0 0
  %1225 = vmatprep.subr.bf16.mxu0 0
  %1226 = vmatpush1.bf16.msra.mxu0 0
  %1227 = vmatprep.subr.bf16.mxu0 0
  %1228 = vmatpush1.bf16.msra.mxu0 0
  %1229 = vmatprep.subr.bf16.mxu0 0
  %1230 = vmatpush1.bf16.msra.mxu0 0
  %1231 = vmatprep.subr.bf16.mxu0 0
  %1232 = vmatpush1.bf16.msra.mxu0 0
  %1233 = vmatprep.mubr.bf16.mxu0 0
  %1234 = vmatmul.mubr.bf16.gmra.mrb[0].mxu0 %v1199
  %v1235 = vpop.f32.mrb[0].mxu0
  %v1236 = vadd.f32 0.0, %v1235
  %v1237 = vpop.f32.mrb[0].mxu0
  %v1238 = vadd.f32 0.0, %v1237
  %v1239 = vpop.f32.mrb[0].mxu0
  %v1240 = vpop.f32.mrb[0].mxu0
  %1241 = vdwg.mxu0
  %1242 = vmatprep.subr.bf16.mxu0 0
  %1243 = vmatpush1.bf16.msra.mxu0 %v973
  %1244 = vmatprep.subr.bf16.mxu0 0
  %1245 = vmatpush1.bf16.msra.mxu0 %v976
  %1246 = vmatprep.subr.bf16.mxu0 0
  %1247 = vmatpush1.bf16.msra.mxu0 0
  %1248 = vmatprep.subr.bf16.mxu0 0
  %1249 = vmatpush1.bf16.msra.mxu0 0
  %1250 = vmatprep.subr.bf16.mxu0 0
  %1251 = vmatpush1.bf16.msra.mxu0 0
  %1252 = vmatprep.subr.bf16.mxu0 0
  %1253 = vmatpush1.bf16.msra.mxu0 0
  %1254 = vmatprep.subr.bf16.mxu0 0
  %1255 = vmatpush1.bf16.msra.mxu0 0
  %1256 = vmatprep.subr.bf16.mxu0 0
  %1257 = vmatpush1.bf16.msra.mxu0 0
  %1258 = vmatprep.subr.bf16.mxu0 0
  %1259 = vmatpush1.bf16.msra.mxu0 0
  %1260 = vmatprep.subr.bf16.mxu0 0
  %1261 = vmatpush1.bf16.msra.mxu0 0
  %1262 = vmatprep.subr.bf16.mxu0 0
  %1263 = vmatpush1.bf16.msra.mxu0 0
  %1264 = vmatprep.subr.bf16.mxu0 0
  %1265 = vmatpush1.bf16.msra.mxu0 0
  %1266 = vmatprep.subr.bf16.mxu0 0
  %1267 = vmatpush1.bf16.msra.mxu0 0
  %1268 = vmatprep.subr.bf16.mxu0 0
  %1269 = vmatpush1.bf16.msra.mxu0 0
  %1270 = vmatprep.subr.bf16.mxu0 0
  %1271 = vmatpush1.bf16.msra.mxu0 0
  %1272 = vmatprep.subr.bf16.mxu0 0
  %1273 = vmatpush1.bf16.msra.mxu0 0
  %1274 = vmatprep.mubr.bf16.mxu0 0
  %1275 = vmatmul.mubr.bf16.gmra.mrb[0].mxu0 %v1199
  %v1276 = vpop.f32.mrb[0].mxu0
  %v1277 = vadd.f32 0.0, %v1276
  %v1278 = vpop.f32.mrb[0].mxu0
  %v1279 = vpop.f32.mrb[0].mxu0
  %v1280 = vpop.f32.mrb[0].mxu0
  %1281 = vdwg.mxu0
  %v1282 = vadd.f32 %v925, %v1236
  %v1283 = vxor.u32 %v1282, 2147483648
  %v1284 = vmul.f32 %v1283, 1.442695
  %v1285 = vpow.pop %v1284
  %v1286 = vadd.f32 %v1285, 1.0
  %v1287 = vrcp.pop %v1286
  %v1288 = vmul.f32 1.0, %v1287
  %v1289 = vadd.f32 %v926, %v1238
  %v1290 = vxor.u32 %v1289, 2147483648
  %v1291 = vmul.f32 %v1290, 1.442695
  %v1292 = vpow.pop %v1291
  %v1293 = vadd.f32 %v1292, 1.0
  %v1294 = vrcp.pop %v1293
  %v1295 = vmul.f32 1.0, %v1294
  %v1296 = vadd.f32 %v1277, %v33
  %v1297 = vmul.f32 %v1288, %v1296
  %v1298 = vadd.f32 %v927, %v1297
  %v1299 = vtanh.pop %v1298
  %v1300 = vsub.f32 1.0, %v1295
  %v1301 = vmul.f32 %v1300, %v1299
  %v1302 = vmul.f32 %v1295, %v1196
  %v1303 = vadd.f32 %v1301, %v1302
  %v1304 = vpack.c.bf16 %v1303, %v1303
  %v1306 = vsel %vm983, %v1304, 0
  %1308 = vmatprep.subr.bf16.mxu0 %v972
  %1309 = vmatpush1.bf16.msra.mxu0 %v971
  %1310 = vmatprep.subr.bf16.mxu0 %v975
  %1311 = vmatpush1.bf16.msra.mxu0 %v974
  %1312 = vmatprep.subr.bf16.mxu0 0
  %1313 = vmatpush1.bf16.msra.mxu0 0
  %1314 = vmatprep.subr.bf16.mxu0 0
  %1315 = vmatpush1.bf16.msra.mxu0 0
  %1316 = vmatprep.subr.bf16.mxu0 0
  %1317 = vmatpush1.bf16.msra.mxu0 0
  %1318 = vmatprep.subr.bf16.mxu0 0
  %1319 = vmatpush1.bf16.msra.mxu0 0
  %1320 = vmatprep.subr.bf16.mxu0 0
  %1321 = vmatpush1.bf16.msra.mxu0 0
  %1322 = vmatprep.subr.bf16.mxu0 0
  %1323 = vmatpush1.bf16.msra.mxu0 0
  %1324 = vmatprep.subr.bf16.mxu0 0
  %1325 = vmatpush1.bf16.msra.mxu0 0
  %1326 = vmatprep.subr.bf16.mxu0 0
  %1327 = vmatpush1.bf16.msra.mxu0 0
  %1328 = vmatprep.subr.bf16.mxu0 0
  %1329 = vmatpush1.bf16.msra.mxu0 0
  %1330 = vmatprep.subr.bf16.mxu0 0
  %1331 = vmatpush1.bf16.msra.mxu0 0
  %1332 = vmatprep.subr.bf16.mxu0 0
  %1333 = vmatpush1.bf16.msra.mxu0 0
  %1334 = vmatprep.subr.bf16.mxu0 0
  %1335 = vmatpush1.bf16.msra.mxu0 0
  %1336 = vmatprep.subr.bf16.mxu0 0
  %1337 = vmatpush1.bf16.msra.mxu0 0
  %1338 = vmatprep.subr.bf16.mxu0 0
  %1339 = vmatpush1.bf16.msra.mxu0 0
  %1340 = vmatprep.mubr.bf16.mxu0 0
  %1341 = vmatmul.mubr.bf16.gmra.mrb[0].mxu0 %v1306
  %v1342 = vpop.f32.mrb[0].mxu0
  %v1343 = vadd.f32 0.0, %v1342
  %v1344 = vpop.f32.mrb[0].mxu0
  %v1345 = vadd.f32 0.0, %v1344
  %v1346 = vpop.f32.mrb[0].mxu0
  %v1347 = vpop.f32.mrb[0].mxu0
  %1348 = vdwg.mxu0
  %1349 = vmatprep.subr.bf16.mxu0 0
  %1350 = vmatpush1.bf16.msra.mxu0 %v973
  %1351 = vmatprep.subr.bf16.mxu0 0
  %1352 = vmatpush1.bf16.msra.mxu0 %v976
  %1353 = vmatprep.subr.bf16.mxu0 0
  %1354 = vmatpush1.bf16.msra.mxu0 0
  %1355 = vmatprep.subr.bf16.mxu0 0
  %1356 = vmatpush1.bf16.msra.mxu0 0
  %1357 = vmatprep.subr.bf16.mxu0 0
  %1358 = vmatpush1.bf16.msra.mxu0 0
  %1359 = vmatprep.subr.bf16.mxu0 0
  %1360 = vmatpush1.bf16.msra.mxu0 0
  %1361 = vmatprep.subr.bf16.mxu0 0
  %1362 = vmatpush1.bf16.msra.mxu0 0
  %1363 = vmatprep.subr.bf16.mxu0 0
  %1364 = vmatpush1.bf16.msra.mxu0 0
  %1365 = vmatprep.subr.bf16.mxu0 0
  %1366 = vmatpush1.bf16.msra.mxu0 0
  %1367 = vmatprep.subr.bf16.mxu0 0
  %1368 = vmatpush1.bf16.msra.mxu0 0
  %1369 = vmatprep.subr.bf16.mxu0 0
  %1370 = vmatpush1.bf16.msra.mxu0 0
  %1371 = vmatprep.subr.bf16.mxu0 0
  %1372 = vmatpush1.bf16.msra.mxu0 0
  %1373 = vmatprep.subr.bf16.mxu0 0
  %1374 = vmatpush1.bf16.msra.mxu0 0
  %1375 = vmatprep.subr.bf16.mxu0 0
  %1376 = vmatpush1.bf16.msra.mxu0 0
  %1377 = vmatprep.subr.bf16.mxu0 0
  %1378 = vmatpush1.bf16.msra.mxu0 0
  %1379 = vmatprep.subr.bf16.mxu0 0
  %1380 = vmatpush1.bf16.msra.mxu0 0
  %1381 = vmatprep.mubr.bf16.mxu0 0
  %1382 = vmatmul.mubr.bf16.gmra.mrb[0].mxu0 %v1306
  %v1383 = vpop.f32.mrb[0].mxu0
  %v1384 = vadd.f32 0.0, %v1383
  %v1385 = vpop.f32.mrb[0].mxu0
  %v1386 = vpop.f32.mrb[0].mxu0
  %v1387 = vpop.f32.mrb[0].mxu0
  %1388 = vdwg.mxu0
  %v1389 = vadd.f32 %v928, %v1343
  %v1390 = vxor.u32 %v1389, 2147483648
  %v1391 = vmul.f32 %v1390, 1.442695
  %v1392 = vpow.pop %v1391
  %v1393 = vadd.f32 %v1392, 1.0
  %v1394 = vrcp.pop %v1393
  %v1395 = vmul.f32 1.0, %v1394
  %v1396 = vadd.f32 %v929, %v1345
  %v1397 = vxor.u32 %v1396, 2147483648
  %v1398 = vmul.f32 %v1397, 1.442695
  %v1399 = vpow.pop %v1398
  %v1400 = vadd.f32 %v1399, 1.0
  %v1401 = vrcp.pop %v1400
  %v1402 = vmul.f32 1.0, %v1401
  %v1403 = vadd.f32 %v1384, %v33
  %v1404 = vmul.f32 %v1395, %v1403
  %v1405 = vadd.f32 %v930, %v1404
  %v1406 = vtanh.pop %v1405
  %v1407 = vsub.f32 1.0, %v1402
  %v1408 = vmul.f32 %v1407, %v1406
  %v1409 = vmul.f32 %v1402, %v1303
  %v1410 = vadd.f32 %v1408, %v1409
  %v1411 = vpack.c.bf16 %v1410, %v1410
  %v1413 = vsel %vm983, %v1411, 0
  %1415 = vmatprep.subr.bf16.mxu0 %v972
  %1416 = vmatpush1.bf16.msra.mxu0 %v971
  %1417 = vmatprep.subr.bf16.mxu0 %v975
  %1418 = vmatpush1.bf16.msra.mxu0 %v974
  %1419 = vmatprep.subr.bf16.mxu0 0
  %1420 = vmatpush1.bf16.msra.mxu0 0
  %1421 = vmatprep.subr.bf16.mxu0 0
  %1422 = vmatpush1.bf16.msra.mxu0 0
  %1423 = vmatprep.subr.bf16.mxu0 0
  %1424 = vmatpush1.bf16.msra.mxu0 0
  %1425 = vmatprep.subr.bf16.mxu0 0
  %1426 = vmatpush1.bf16.msra.mxu0 0
  %1427 = vmatprep.subr.bf16.mxu0 0
  %1428 = vmatpush1.bf16.msra.mxu0 0
  %1429 = vmatprep.subr.bf16.mxu0 0
  %1430 = vmatpush1.bf16.msra.mxu0 0
  %1431 = vmatprep.subr.bf16.mxu0 0
  %1432 = vmatpush1.bf16.msra.mxu0 0
  %1433 = vmatprep.subr.bf16.mxu0 0
  %1434 = vmatpush1.bf16.msra.mxu0 0
  %1435 = vmatprep.subr.bf16.mxu0 0
  %1436 = vmatpush1.bf16.msra.mxu0 0
  %1437 = vmatprep.subr.bf16.mxu0 0
  %1438 = vmatpush1.bf16.msra.mxu0 0
  %1439 = vmatprep.subr.bf16.mxu0 0
  %1440 = vmatpush1.bf16.msra.mxu0 0
  %1441 = vmatprep.subr.bf16.mxu0 0
  %1442 = vmatpush1.bf16.msra.mxu0 0
  %1443 = vmatprep.subr.bf16.mxu0 0
  %1444 = vmatpush1.bf16.msra.mxu0 0
  %1445 = vmatprep.subr.bf16.mxu0 0
  %1446 = vmatpush1.bf16.msra.mxu0 0
  %1447 = vmatprep.mubr.bf16.mxu0 0
  %1448 = vmatmul.mubr.bf16.gmra.mrb[0].mxu0 %v1413
  %v1449 = vpop.f32.mrb[0].mxu0
  %v1450 = vadd.f32 0.0, %v1449
  %v1451 = vpop.f32.mrb[0].mxu0
  %v1452 = vadd.f32 0.0, %v1451
  %v1453 = vpop.f32.mrb[0].mxu0
  %v1454 = vpop.f32.mrb[0].mxu0
  %1455 = vdwg.mxu0
  %1456 = vmatprep.subr.bf16.mxu0 0
  %1457 = vmatpush1.bf16.msra.mxu0 %v973
  %1458 = vmatprep.subr.bf16.mxu0 0
  %1459 = vmatpush1.bf16.msra.mxu0 %v976
  %1460 = vmatprep.subr.bf16.mxu0 0
  %1461 = vmatpush1.bf16.msra.mxu0 0
  %1462 = vmatprep.subr.bf16.mxu0 0
  %1463 = vmatpush1.bf16.msra.mxu0 0
  %1464 = vmatprep.subr.bf16.mxu0 0
  %1465 = vmatpush1.bf16.msra.mxu0 0
  %1466 = vmatprep.subr.bf16.mxu0 0
  %1467 = vmatpush1.bf16.msra.mxu0 0
  %1468 = vmatprep.subr.bf16.mxu0 0
  %1469 = vmatpush1.bf16.msra.mxu0 0
  %1470 = vmatprep.subr.bf16.mxu0 0
  %1471 = vmatpush1.bf16.msra.mxu0 0
  %1472 = vmatprep.subr.bf16.mxu0 0
  %1473 = vmatpush1.bf16.msra.mxu0 0
  %1474 = vmatprep.subr.bf16.mxu0 0
  %1475 = vmatpush1.bf16.msra.mxu0 0
  %1476 = vmatprep.subr.bf16.mxu0 0
  %1477 = vmatpush1.bf16.msra.mxu0 0
  %1478 = vmatprep.subr.bf16.mxu0 0
  %1479 = vmatpush1.bf16.msra.mxu0 0
  %1480 = vmatprep.subr.bf16.mxu0 0
  %1481 = vmatpush1.bf16.msra.mxu0 0
  %1482 = vmatprep.subr.bf16.mxu0 0
  %1483 = vmatpush1.bf16.msra.mxu0 0
  %1484 = vmatprep.subr.bf16.mxu0 0
  %1485 = vmatpush1.bf16.msra.mxu0 0
  %1486 = vmatprep.subr.bf16.mxu0 0
  %1487 = vmatpush1.bf16.msra.mxu0 0
  %1488 = vmatprep.mubr.bf16.mxu0 0
  %1489 = vmatmul.mubr.bf16.gmra.mrb[0].mxu0 %v1413
  %v1490 = vpop.f32.mrb[0].mxu0
  %v1491 = vadd.f32 0.0, %v1490
  %v1492 = vpop.f32.mrb[0].mxu0
  %v1493 = vpop.f32.mrb[0].mxu0
  %v1494 = vpop.f32.mrb[0].mxu0
  %1495 = vdwg.mxu0
  %v1496 = vadd.f32 %v931, %v1450
  %v1497 = vxor.u32 %v1496, 2147483648
  %v1498 = vmul.f32 %v1497, 1.442695
  %v1499 = vpow.pop %v1498
  %v1500 = vadd.f32 %v1499, 1.0
  %v1501 = vrcp.pop %v1500
  %v1502 = vmul.f32 1.0, %v1501
  %v1503 = vadd.f32 %v932, %v1452
  %v1504 = vxor.u32 %v1503, 2147483648
  %v1505 = vmul.f32 %v1504, 1.442695
  %v1506 = vpow.pop %v1505
  %v1507 = vadd.f32 %v1506, 1.0
  %v1508 = vrcp.pop %v1507
  %v1509 = vmul.f32 1.0, %v1508
  %v1510 = vadd.f32 %v1491, %v33
  %v1511 = vmul.f32 %v1502, %v1510
  %v1512 = vadd.f32 %v933, %v1511
  %v1513 = vtanh.pop %v1512
  %v1514 = vsub.f32 1.0, %v1509
  %v1515 = vmul.f32 %v1514, %v1513
  %v1516 = vmul.f32 %v1509, %v1410
  %v1517 = vadd.f32 %v1515, %v1516
  %v1518 = vpack.c.bf16 %v1517, %v1517
  %v1520 = vsel %vm983, %v1518, 0
  %1522 = vmatprep.subr.bf16.mxu0 %v972
  %1523 = vmatpush1.bf16.msra.mxu0 %v971
  %1524 = vmatprep.subr.bf16.mxu0 %v975
  %1525 = vmatpush1.bf16.msra.mxu0 %v974
  %1526 = vmatprep.subr.bf16.mxu0 0
  %1527 = vmatpush1.bf16.msra.mxu0 0
  %1528 = vmatprep.subr.bf16.mxu0 0
  %1529 = vmatpush1.bf16.msra.mxu0 0
  %1530 = vmatprep.subr.bf16.mxu0 0
  %1531 = vmatpush1.bf16.msra.mxu0 0
  %1532 = vmatprep.subr.bf16.mxu0 0
  %1533 = vmatpush1.bf16.msra.mxu0 0
  %1534 = vmatprep.subr.bf16.mxu0 0
  %1535 = vmatpush1.bf16.msra.mxu0 0
  %1536 = vmatprep.subr.bf16.mxu0 0
  %1537 = vmatpush1.bf16.msra.mxu0 0
  %1538 = vmatprep.subr.bf16.mxu0 0
  %1539 = vmatpush1.bf16.msra.mxu0 0
  %1540 = vmatprep.subr.bf16.mxu0 0
  %1541 = vmatpush1.bf16.msra.mxu0 0
  %1542 = vmatprep.subr.bf16.mxu0 0
  %1543 = vmatpush1.bf16.msra.mxu0 0
  %1544 = vmatprep.subr.bf16.mxu0 0
  %1545 = vmatpush1.bf16.msra.mxu0 0
  %1546 = vmatprep.subr.bf16.mxu0 0
  %1547 = vmatpush1.bf16.msra.mxu0 0
  %1548 = vmatprep.subr.bf16.mxu0 0
  %1549 = vmatpush1.bf16.msra.mxu0 0
  %1550 = vmatprep.subr.bf16.mxu0 0
  %1551 = vmatpush1.bf16.msra.mxu0 0
  %1552 = vmatprep.subr.bf16.mxu0 0
  %1553 = vmatpush1.bf16.msra.mxu0 0
  %1554 = vmatprep.mubr.bf16.mxu0 0
  %1555 = vmatmul.mubr.bf16.gmra.mrb[0].mxu0 %v1520
  %v1556 = vpop.f32.mrb[0].mxu0
  %v1557 = vadd.f32 0.0, %v1556
  %v1558 = vpop.f32.mrb[0].mxu0
  %v1559 = vadd.f32 0.0, %v1558
  %v1560 = vpop.f32.mrb[0].mxu0
  %v1561 = vpop.f32.mrb[0].mxu0
  %1562 = vdwg.mxu0
  %1563 = vmatprep.subr.bf16.mxu0 0
  %1564 = vmatpush1.bf16.msra.mxu0 %v973
  %1565 = vmatprep.subr.bf16.mxu0 0
  %1566 = vmatpush1.bf16.msra.mxu0 %v976
  %1567 = vmatprep.subr.bf16.mxu0 0
  %1568 = vmatpush1.bf16.msra.mxu0 0
  %1569 = vmatprep.subr.bf16.mxu0 0
  %1570 = vmatpush1.bf16.msra.mxu0 0
  %1571 = vmatprep.subr.bf16.mxu0 0
  %1572 = vmatpush1.bf16.msra.mxu0 0
  %1573 = vmatprep.subr.bf16.mxu0 0
  %1574 = vmatpush1.bf16.msra.mxu0 0
  %1575 = vmatprep.subr.bf16.mxu0 0
  %1576 = vmatpush1.bf16.msra.mxu0 0
  %1577 = vmatprep.subr.bf16.mxu0 0
  %1578 = vmatpush1.bf16.msra.mxu0 0
  %1579 = vmatprep.subr.bf16.mxu0 0
  %1580 = vmatpush1.bf16.msra.mxu0 0
  %1581 = vmatprep.subr.bf16.mxu0 0
  %1582 = vmatpush1.bf16.msra.mxu0 0
  %1583 = vmatprep.subr.bf16.mxu0 0
  %1584 = vmatpush1.bf16.msra.mxu0 0
  %1585 = vmatprep.subr.bf16.mxu0 0
  %1586 = vmatpush1.bf16.msra.mxu0 0
  %1587 = vmatprep.subr.bf16.mxu0 0
  %1588 = vmatpush1.bf16.msra.mxu0 0
  %1589 = vmatprep.subr.bf16.mxu0 0
  %1590 = vmatpush1.bf16.msra.mxu0 0
  %1591 = vmatprep.subr.bf16.mxu0 0
  %1592 = vmatpush1.bf16.msra.mxu0 0
  %1593 = vmatprep.subr.bf16.mxu0 0
  %1594 = vmatpush1.bf16.msra.mxu0 0
  %1595 = vmatprep.mubr.bf16.mxu0 0
  %1596 = vmatmul.mubr.bf16.gmra.mrb[0].mxu0 %v1520
  %v1597 = vpop.f32.mrb[0].mxu0
  %v1598 = vadd.f32 0.0, %v1597
  %v1599 = vpop.f32.mrb[0].mxu0
  %v1600 = vpop.f32.mrb[0].mxu0
  %v1601 = vpop.f32.mrb[0].mxu0
  %1602 = vdwg.mxu0
  %v1603 = vadd.f32 %v934, %v1557
  %v1604 = vxor.u32 %v1603, 2147483648
  %v1605 = vmul.f32 %v1604, 1.442695
  %v1606 = vpow.pop %v1605
  %v1607 = vadd.f32 %v1606, 1.0
  %v1608 = vrcp.pop %v1607
  %v1609 = vmul.f32 1.0, %v1608
  %v1610 = vadd.f32 %v935, %v1559
  %v1611 = vxor.u32 %v1610, 2147483648
  %v1612 = vmul.f32 %v1611, 1.442695
  %v1613 = vpow.pop %v1612
  %v1614 = vadd.f32 %v1613, 1.0
  %v1615 = vrcp.pop %v1614
  %v1616 = vmul.f32 1.0, %v1615
  %v1617 = vadd.f32 %v1598, %v33
  %v1618 = vmul.f32 %v1609, %v1617
  %v1619 = vadd.f32 %v936, %v1618
  %v1620 = vtanh.pop %v1619
  %v1621 = vsub.f32 1.0, %v1616
  %v1622 = vmul.f32 %v1621, %v1620
  %v1623 = vmul.f32 %v1616, %v1517
  %v1624 = vadd.f32 %v1622, %v1623
  %v1625 = vpack.c.bf16 %v1624, %v1624
  %v1627 = vsel %vm983, %v1625, 0
  %1629 = vmatprep.subr.bf16.mxu0 %v972
  %1630 = vmatpush1.bf16.msra.mxu0 %v971
  %1631 = vmatprep.subr.bf16.mxu0 %v975
  %1632 = vmatpush1.bf16.msra.mxu0 %v974
  %1633 = vmatprep.subr.bf16.mxu0 0
  %1634 = vmatpush1.bf16.msra.mxu0 0
  %1635 = vmatprep.subr.bf16.mxu0 0
  %1636 = vmatpush1.bf16.msra.mxu0 0
  %1637 = vmatprep.subr.bf16.mxu0 0
  %1638 = vmatpush1.bf16.msra.mxu0 0
  %1639 = vmatprep.subr.bf16.mxu0 0
  %1640 = vmatpush1.bf16.msra.mxu0 0
  %1641 = vmatprep.subr.bf16.mxu0 0
  %1642 = vmatpush1.bf16.msra.mxu0 0
  %1643 = vmatprep.subr.bf16.mxu0 0
  %1644 = vmatpush1.bf16.msra.mxu0 0
  %1645 = vmatprep.subr.bf16.mxu0 0
  %1646 = vmatpush1.bf16.msra.mxu0 0
  %1647 = vmatprep.subr.bf16.mxu0 0
  %1648 = vmatpush1.bf16.msra.mxu0 0
  %1649 = vmatprep.subr.bf16.mxu0 0
  %1650 = vmatpush1.bf16.msra.mxu0 0
  %1651 = vmatprep.subr.bf16.mxu0 0
  %1652 = vmatpush1.bf16.msra.mxu0 0
  %1653 = vmatprep.subr.bf16.mxu0 0
  %1654 = vmatpush1.bf16.msra.mxu0 0
  %1655 = vmatprep.subr.bf16.mxu0 0
  %1656 = vmatpush1.bf16.msra.mxu0 0
  %1657 = vmatprep.subr.bf16.mxu0 0
  %1658 = vmatpush1.bf16.msra.mxu0 0
  %1659 = vmatprep.subr.bf16.mxu0 0
  %1660 = vmatpush1.bf16.msra.mxu0 0
  %1661 = vmatprep.mubr.bf16.mxu0 0
  %1662 = vmatmul.mubr.bf16.gmra.mrb[0].mxu0 %v1627
  %v1663 = vpop.f32.mrb[0].mxu0
  %v1664 = vadd.f32 0.0, %v1663
  %v1665 = vpop.f32.mrb[0].mxu0
  %v1666 = vadd.f32 0.0, %v1665
  %v1667 = vpop.f32.mrb[0].mxu0
  %v1668 = vpop.f32.mrb[0].mxu0
  %1669 = vdwg.mxu0
  %1670 = vmatprep.subr.bf16.mxu0 0
  %1671 = vmatpush1.bf16.msra.mxu0 %v973
  %1672 = vmatprep.subr.bf16.mxu0 0
  %1673 = vmatpush1.bf16.msra.mxu0 %v976
  %1674 = vmatprep.subr.bf16.mxu0 0
  %1675 = vmatpush1.bf16.msra.mxu0 0
  %1676 = vmatprep.subr.bf16.mxu0 0
  %1677 = vmatpush1.bf16.msra.mxu0 0
  %1678 = vmatprep.subr.bf16.mxu0 0
  %1679 = vmatpush1.bf16.msra.mxu0 0
  %1680 = vmatprep.subr.bf16.mxu0 0
  %1681 = vmatpush1.bf16.msra.mxu0 0
  %1682 = vmatprep.subr.bf16.mxu0 0
  %1683 = vmatpush1.bf16.msra.mxu0 0
  %1684 = vmatprep.subr.bf16.mxu0 0
  %1685 = vmatpush1.bf16.msra.mxu0 0
  %1686 = vmatprep.subr.bf16.mxu0 0
  %1687 = vmatpush1.bf16.msra.mxu0 0
  %1688 = vmatprep.subr.bf16.mxu0 0
  %1689 = vmatpush1.bf16.msra.mxu0 0
  %1690 = vmatprep.subr.bf16.mxu0 0
  %1691 = vmatpush1.bf16.msra.mxu0 0
  %1692 = vmatprep.subr.bf16.mxu0 0
  %1693 = vmatpush1.bf16.msra.mxu0 0
  %1694 = vmatprep.subr.bf16.mxu0 0
  %1695 = vmatpush1.bf16.msra.mxu0 0
  %1696 = vmatprep.subr.bf16.mxu0 0
  %1697 = vmatpush1.bf16.msra.mxu0 0
  %1698 = vmatprep.subr.bf16.mxu0 0
  %1699 = vmatpush1.bf16.msra.mxu0 0
  %1700 = vmatprep.subr.bf16.mxu0 0
  %1701 = vmatpush1.bf16.msra.mxu0 0
  %1702 = vmatprep.mubr.bf16.mxu0 0
  %1703 = vmatmul.mubr.bf16.gmra.mrb[0].mxu0 %v1627
  %v1704 = vpop.f32.mrb[0].mxu0
  %v1705 = vadd.f32 0.0, %v1704
  %v1706 = vpop.f32.mrb[0].mxu0
  %v1707 = vpop.f32.mrb[0].mxu0
  %v1708 = vpop.f32.mrb[0].mxu0
  %1709 = vdwg.mxu0
  %v1710 = vadd.f32 %v937, %v1664
  %v1711 = vxor.u32 %v1710, 2147483648
  %v1712 = vmul.f32 %v1711, 1.442695
  %v1713 = vpow.pop %v1712
  %v1714 = vadd.f32 %v1713, 1.0
  %v1715 = vrcp.pop %v1714
  %v1716 = vmul.f32 1.0, %v1715
  %v1717 = vadd.f32 %v938, %v1666
  %v1718 = vxor.u32 %v1717, 2147483648
  %v1719 = vmul.f32 %v1718, 1.442695
  %v1720 = vpow.pop %v1719
  %v1721 = vadd.f32 %v1720, 1.0
  %v1722 = vrcp.pop %v1721
  %v1723 = vmul.f32 1.0, %v1722
  %v1724 = vadd.f32 %v1705, %v33
  %v1725 = vmul.f32 %v1716, %v1724
  %v1726 = vadd.f32 %v939, %v1725
  %v1727 = vtanh.pop %v1726
  %v1728 = vsub.f32 1.0, %v1723
  %v1729 = vmul.f32 %v1728, %v1727
  %v1730 = vmul.f32 %v1723, %v1624
  %v1731 = vadd.f32 %v1729, %v1730
  %v1732 = vpack.c.bf16 %v1731, %v1731
  %v1734 = vsel %vm983, %v1732, 0
  %1736 = vmatprep.subr.bf16.mxu0 %v972
  %1737 = vmatpush1.bf16.msra.mxu0 %v971
  %1738 = vmatprep.subr.bf16.mxu0 %v975
  %1739 = vmatpush1.bf16.msra.mxu0 %v974
  %1740 = vmatprep.subr.bf16.mxu0 0
  %1741 = vmatpush1.bf16.msra.mxu0 0
  %1742 = vmatprep.subr.bf16.mxu0 0
  %1743 = vmatpush1.bf16.msra.mxu0 0
  %1744 = vmatprep.subr.bf16.mxu0 0
  %1745 = vmatpush1.bf16.msra.mxu0 0
  %1746 = vmatprep.subr.bf16.mxu0 0
  %1747 = vmatpush1.bf16.msra.mxu0 0
  %1748 = vmatprep.subr.bf16.mxu0 0
  %1749 = vmatpush1.bf16.msra.mxu0 0
  %1750 = vmatprep.subr.bf16.mxu0 0
  %1751 = vmatpush1.bf16.msra.mxu0 0
  %1752 = vmatprep.subr.bf16.mxu0 0
  %1753 = vmatpush1.bf16.msra.mxu0 0
  %1754 = vmatprep.subr.bf16.mxu0 0
  %1755 = vmatpush1.bf16.msra.mxu0 0
  %1756 = vmatprep.subr.bf16.mxu0 0
  %1757 = vmatpush1.bf16.msra.mxu0 0
  %1758 = vmatprep.subr.bf16.mxu0 0
  %1759 = vmatpush1.bf16.msra.mxu0 0
  %1760 = vmatprep.subr.bf16.mxu0 0
  %1761 = vmatpush1.bf16.msra.mxu0 0
  %1762 = vmatprep.subr.bf16.mxu0 0
  %1763 = vmatpush1.bf16.msra.mxu0 0
  %1764 = vmatprep.subr.bf16.mxu0 0
  %1765 = vmatpush1.bf16.msra.mxu0 0
  %1766 = vmatprep.subr.bf16.mxu0 0
  %1767 = vmatpush1.bf16.msra.mxu0 0
  %1768 = vmatprep.mubr.bf16.mxu0 0
  %1769 = vmatmul.mubr.bf16.gmra.mrb[0].mxu0 %v1734
  %v1770 = vpop.f32.mrb[0].mxu0
  %v1771 = vadd.f32 0.0, %v1770
  %v1772 = vpop.f32.mrb[0].mxu0
  %v1773 = vadd.f32 0.0, %v1772
  %v1774 = vpop.f32.mrb[0].mxu0
  %v1775 = vpop.f32.mrb[0].mxu0
  %1776 = vdwg.mxu0
  %1777 = vmatprep.subr.bf16.mxu0 0
  %1778 = vmatpush1.bf16.msra.mxu0 %v973
  %1779 = vmatprep.subr.bf16.mxu0 0
  %1780 = vmatpush1.bf16.msra.mxu0 %v976
  %1781 = vmatprep.subr.bf16.mxu0 0
  %1782 = vmatpush1.bf16.msra.mxu0 0
  %1783 = vmatprep.subr.bf16.mxu0 0
  %1784 = vmatpush1.bf16.msra.mxu0 0
  %1785 = vmatprep.subr.bf16.mxu0 0
  %1786 = vmatpush1.bf16.msra.mxu0 0
  %1787 = vmatprep.subr.bf16.mxu0 0
  %1788 = vmatpush1.bf16.msra.mxu0 0
  %1789 = vmatprep.subr.bf16.mxu0 0
  %1790 = vmatpush1.bf16.msra.mxu0 0
  %1791 = vmatprep.subr.bf16.mxu0 0
  %1792 = vmatpush1.bf16.msra.mxu0 0
  %1793 = vmatprep.subr.bf16.mxu0 0
  %1794 = vmatpush1.bf16.msra.mxu0 0
  %1795 = vmatprep.subr.bf16.mxu0 0
  %1796 = vmatpush1.bf16.msra.mxu0 0
  %1797 = vmatprep.subr.bf16.mxu0 0
  %1798 = vmatpush1.bf16.msra.mxu0 0
  %1799 = vmatprep.subr.bf16.mxu0 0
  %1800 = vmatpush1.bf16.msra.mxu0 0
  %1801 = vmatprep.subr.bf16.mxu0 0
  %1802 = vmatpush1.bf16.msra.mxu0 0
  %1803 = vmatprep.subr.bf16.mxu0 0
  %1804 = vmatpush1.bf16.msra.mxu0 0
  %1805 = vmatprep.subr.bf16.mxu0 0
  %1806 = vmatpush1.bf16.msra.mxu0 0
  %1807 = vmatprep.subr.bf16.mxu0 0
  %1808 = vmatpush1.bf16.msra.mxu0 0
  %1809 = vmatprep.mubr.bf16.mxu0 0
  %1810 = vmatmul.mubr.bf16.gmra.mrb[0].mxu0 %v1734
  %v1811 = vpop.f32.mrb[0].mxu0
  %v1812 = vadd.f32 0.0, %v1811
  %v1813 = vpop.f32.mrb[0].mxu0
  %v1814 = vpop.f32.mrb[0].mxu0
  %v1815 = vpop.f32.mrb[0].mxu0
  %1816 = vdwg.mxu0
  %v1817 = vadd.f32 %v940, %v1771
  %v1818 = vxor.u32 %v1817, 2147483648
  %v1819 = vmul.f32 %v1818, 1.442695
  %v1820 = vpow.pop %v1819
  %v1821 = vadd.f32 %v1820, 1.0
  %v1822 = vrcp.pop %v1821
  %v1823 = vmul.f32 1.0, %v1822
  %v1824 = vadd.f32 %v941, %v1773
  %v1825 = vxor.u32 %v1824, 2147483648
  %v1826 = vmul.f32 %v1825, 1.442695
  %v1827 = vpow.pop %v1826
  %v1828 = vadd.f32 %v1827, 1.0
  %v1829 = vrcp.pop %v1828
  %v1830 = vmul.f32 1.0, %v1829
  %v1831 = vadd.f32 %v1812, %v33
  %v1832 = vmul.f32 %v1823, %v1831
  %v1833 = vadd.f32 %v942, %v1832
  %v1834 = vtanh.pop %v1833
  %v1835 = vsub.f32 1.0, %v1830
  %v1836 = vmul.f32 %v1835, %v1834
  %v1837 = vmul.f32 %v1830, %v1731
  %v1838 = vadd.f32 %v1836, %v1837
  %1839 = vst [vmem:[%s7] sm:$0xff] %v1838
  // Predicated region
  $region30: #{apply.1} parent=0 // pred_check
    _
  $region31: #{apply.1} parent=0 // pred_check_branch
    %1841 = sbr.rel (0) target = $region33
  $region32: #{apply.1} parent=0 // pred_region
    _
  $region33: #{apply.1} parent=0 // pred_fallthru
    _
  // Predicated region
  $region34: #{apply.1} parent=0 // pred_check
    _
  $region35: #{apply.1} parent=0 // pred_check_branch
    %1843 = sbr.rel (0) target = $region37
  $region36: #{apply.1} parent=0 // pred_region
    _
  $region37: #{apply.1} parent=0 // pred_fallthru
    _

</llo_original>
